<compile_context>
chip_gen: v5e
topology: v5e:2x2
jax: 0.10.0
libtpu: 0.0.40
codegen_flags: <defaults>
</compile_context>

<pallas_src>
import functools

import numpy as np
import jax
import jax.numpy as jnp
from jax.experimental import pallas as pl
from jax.experimental.pallas import tpu as pltpu


# -----------------------------------------------------------------------------
# Pallas kernels
# -----------------------------------------------------------------------------
def _fc_kernel(x_ref, w_ref, b_ref, o_ref):
    # x: (B, D) bf16, w: (D, TF) bf16, b: (1, TF) f32 -> o: (B, TF) bf16
    acc = jnp.dot(x_ref[...], w_ref[...],
                  preferred_element_type=jnp.float32) + b_ref[...]
    o_ref[...] = acc.astype(o_ref.dtype)


def _fused_decoder_kernel(h_ref, halo_ref, w1t_ref, b1_ref, w2t_ref, b2_ref,
                          o_ref, xext_ref, *, L_total):
    # h_ref   : (1, 64, TL)     bf16 activation tile, NCW (time on lanes)
    # halo_ref: (1, 1, 64, 4)   bf16: cols [x[t0-2], x[t0-1], x[t0+TL], x[t0+TL+1]]
    #                           (zeros outside [0, L))
    # w1t_ref : (3, 32, 64)     bf16, w1t[k] = W1[:, :, k].T
    # b1_ref  : (32, 1)         f32
    # w2t_ref : (3, 32)         f32, w2t[k, d] = W2[d, 0, k]
    # b2_ref  : (1, 1)          f32
    # o_ref   : (1, 2, TL)      f32, row 0 = even output samples, row 1 = odd
    # xext_ref: (64, TL+4)      bf16 scratch, halo-extended input tile
    TL = h_ref.shape[2]
    TLE = TL + 2                      # y / taps cover absolute times [t0-1, t0+TL]
    tj = pl.program_id(1)
    t0 = tj * TL

    # Assemble the 2-column-halo-extended input tile in VMEM:
    #   xext[:, j] = x[:, t0 - 2 + j]
    xext_ref[:, 0:2] = halo_ref[0, 0, :, 0:2]             # x[:, t0-2], x[:, t0-1]
    xext_ref[:, 2:TL + 2] = h_ref[0]                      # the tile itself
    xext_ref[:, TL + 2:TL + 4] = halo_ref[0, 0, :, 2:4]   # x[:, t0+TL], x[:, t0+TL+1]
    x_ext = xext_ref[...]                                 # (64, TL+4) bf16

    # deconv1 (ConvTranspose1d k=3, s=1, p=1) + ReLU over the extended range:
    #   y[d, t] = relu(sum_c x[c,t+1] W1[c,d,0] + x[c,t] W1[c,d,1]
    #                        + x[c,t-1] W1[c,d,2] + b1[d])
    # Three accumulated K=64 MXU matmuls on shifted views (no xcat scratch).
    acc = jnp.dot(w1t_ref[0], x_ext[:, 2:2 + TLE],
                  preferred_element_type=jnp.float32)
    acc += jnp.dot(w1t_ref[1], x_ext[:, 1:1 + TLE],
                   preferred_element_type=jnp.float32)
    acc += jnp.dot(w1t_ref[2], x_ext[:, 0:TLE],
                   preferred_element_type=jnp.float32)
    y_ext = jnp.maximum(acc + b1_ref[...], 0.0)           # (32, TLE) f32

    # deconv2 taps on the (otherwise under-used) MXU:
    #   p[k, i] = sum_d y[d, i] * W2[d, 0, k]
    p = jnp.dot(w2t_ref[...], y_ext,
                preferred_element_type=jnp.float32)       # (3, TLE)

    # Zero taps whose absolute time lies outside [0, L): the reference deconv2
    # zero-pads its input, so p0[L] and p2[-1] must be exactly 0 (not relu(b1)).
    col = jax.lax.broadcasted_iota(jnp.int32, (1, TLE), 1) + (t0 - 1)
    p = jnp.where((col >= 0) & (col < L_total), p, 0.0)

    # 2x nearest upsample folded into deconv2's tap indexing
    # (u[2t] = u[2t+1] = y[t]):
    #   z[2t]   = p0[t]   + p1[t] + p2[t-1] + b2
    #   z[2t+1] = p0[t+1] + p1[t] + p2[t]   + b2
    # p column i corresponds to absolute time t0 - 1 + i.
    b2 = b2_ref[...]
    z_even = p[0:1, 1:TL + 1] + p[1:2, 1:TL + 1] + p[2:3, 0:TL] + b2
    z_odd = p[0:1, 2:TL + 2] + p[1:2, 1:TL + 1] + p[2:3, 1:TL + 1] + b2
    # Single lane-dense (2, TL) store (merged even/odd epilogue stores).
    o_ref[0] = jax.nn.sigmoid(jnp.concatenate([z_even, z_odd], axis=0))


# -----------------------------------------------------------------------------
# Tile-size helpers
# -----------------------------------------------------------------------------
def _pick_f_tile(F, max_tile=8192):
    """Largest multiple of 128 (<= max_tile) that divides F; else fall back."""
    best = 0
    cap = min(F, max_tile)
    for t in range(128, cap + 1, 128):
        if F % t == 0:
            best = t
    # Fallback: ragged last tile.  Padded weight columns feed outputs that are
    # discarded -- functionally fine, noted as fragile if NaN-checking changes.
    return best if best else cap


def _pick_time_tile(L, max_tile=2048):
    """Time-tile for the fused stage: full L if small, else a dividing 128-multiple."""
    if L <= max_tile:
        return L
    best = 0
    for t in range(128, max_tile + 1, 128):
        if L % t == 0:
            best = t
    if best:
        return best
    # TODO(synk): production L (e.g. 17745) is not divisible by any multiple of
    # 128; this falls back to a cdiv grid with a ragged last tile (the in-kernel
    # validity mask zeroes out-of-range taps).
    return max_tile


# -----------------------------------------------------------------------------
# pallas_call wrappers
# -----------------------------------------------------------------------------
def fc_pallas(x_bf16, w_bf16, b2d, tile_f):
    B, D = x_bf16.shape
    F = w_bf16.shape[1]
    grid = (pl.cdiv(F, tile_f),)
    return pl.pallas_call(
        _fc_kernel,
        out_shape=jax.ShapeDtypeStruct((B, F), jnp.bfloat16),
        grid=grid,
        in_specs=[
            pl.BlockSpec((B, D), lambda j: (0, 0)),
            pl.BlockSpec((D, tile_f), lambda j: (0, j)),
            pl.BlockSpec((1, tile_f), lambda j: (0, j)),
        ],
        out_specs=pl.BlockSpec((B, tile_f), lambda j: (0, j)),
        compiler_params=pltpu.CompilerParams(
            dimension_semantics=("parallel",),
            vmem_limit_bytes=64 * 1024 * 1024),
    )(x_bf16, w_bf16, b2d)


def _build_halos(h, tl):
    """Per-tile 2-column left/right halos of h (zeros past the array ends).

    h: (B, Cin, L).  Returns (B, n_t, Cin, 4):
      [..., 0:2] = h[:, :, t0-2:t0], [..., 2:4] = h[:, :, t0+tl:t0+tl+2].
    Only 4*n_t columns are gathered -> negligible HBM traffic.
    """
    B, Cin, L = h.shape
    n_t = pl.cdiv(L, tl)
    starts = jnp.arange(n_t, dtype=jnp.int32) * tl
    cols = jnp.concatenate(
        [starts[:, None] + jnp.array([-2, -1], jnp.int32),
         starts[:, None] + jnp.array([tl, tl + 1], jnp.int32)], axis=1)  # (n_t, 4)
    valid = (cols >= 0) & (cols < L)
    gathered = h[:, :, jnp.clip(cols, 0, L - 1)]                         # (B, Cin, n_t, 4)
    halos = jnp.where(valid[None, None, :, :], gathered, 0)
    return halos.transpose(0, 2, 1, 3)                                   # (B, n_t, Cin, 4)


def fused_conv_pallas(h, halos, w1t, b1_col, w2t, b2_11, tl):
    # h: (B, 64, L) bf16; returns (B, 2, L) f32: row 0 = even samples, 1 = odd.
    B, Cin, L = h.shape
    n_t = pl.cdiv(L, tl)
    kernel = functools.partial(_fused_decoder_kernel, L_total=L)
    return pl.pallas_call(
        kernel,
        out_shape=jax.ShapeDtypeStruct((B, 2, L), jnp.float32),
        grid=(B, n_t),
        in_specs=[
            pl.BlockSpec((1, Cin, tl), lambda b, t: (b, 0, t)),
            pl.BlockSpec((1, 1, Cin, 4), lambda b, t: (b, t, 0, 0)),
            pl.BlockSpec((3, 32, Cin), lambda b, t: (0, 0, 0)),
            pl.BlockSpec((32, 1), lambda b, t: (0, 0)),
            pl.BlockSpec((3, 32), lambda b, t: (0, 0)),
            pl.BlockSpec((1, 1), lambda b, t: (0, 0)),
        ],
        out_specs=pl.BlockSpec((1, 2, tl), lambda b, t: (b, 0, t)),
        scratch_shapes=[pltpu.VMEM((Cin, tl + 4), h.dtype)],
        compiler_params=pltpu.CompilerParams(
            dimension_semantics=("parallel", "parallel"),
            vmem_limit_bytes=32 * 1024 * 1024),
        # TODO(synk): optional further fusion (fc computed per time-tile
        # in-kernel, eliminating the h HBM round trip) and fp8 weight streaming
        # for v7x are follow-ups once the accuracy budget is confirmed.
    )(h, halos, w1t, b1_col, w2t, b2_11)


# -----------------------------------------------------------------------------
# Decoder (deterministic synthetic parameters)
# -----------------------------------------------------------------------------
class ClassicalDecoderPallas:
    def __init__(self, output_length=16, latent_dim=32, key=jax.random.PRNGKey(0)):
        self.output_length = output_length * 5       # matches torch __init__
        self.L = self.output_length // 2             # deconv1 time length
        self.latent_dim = latent_dim
        F = self.L * 64
        ks = jax.random.split(key, 6)
        s = 0.05
        # f32 master copies (used by the pure-f32 reference)
        self.W_fc = jax.random.normal(ks[0], (latent_dim, F), jnp.float32) * s
        self.b_fc = jax.random.normal(ks[1], (F,), jnp.float32) * s
        self.W1 = jax.random.normal(ks[2], (64, 32, 3), jnp.float32) * s   # torch (Cin,Cout,k)
        self.b1 = jax.random.normal(ks[3], (32,), jnp.float32) * s
        self.W2 = jax.random.normal(ks[4], (32, 1, 3), jnp.float32) * s
        self.b2 = jax.random.normal(ks[5], (1,), jnp.float32) * s

        # Kernel-side parameter forms, prepared once (no per-call transposes).
        self.W_fc_bf16 = self.W_fc.astype(jnp.bfloat16)   # halves fc HBM traffic
        self.b_fc_2d = self.b_fc.reshape(1, F)
        # Per-tap transposed deconv1 weights (3, 32, 64): w1t[k] pairs with x[:, t+1-k].
        self.W1T = jnp.stack([self.W1[:, :, k].T for k in range(3)],
                             axis=0).astype(jnp.bfloat16)
        self.b1_col = self.b1.reshape(-1, 1)              # (32, 1)
        self.W2T = jnp.transpose(self.W2[:, 0, :])        # (3, 32), w2t[k,d]=W2[d,0,k]
        self.b2_11 = self.b2.reshape(1, 1)                # (1, 1)
        self.tile_f = _pick_f_tile(F)
        self.tl = _pick_time_tile(self.L)

    def __call__(self, x):
        B = x.shape[0]
        L = self.L
        # fc: bf16 weight stream, f32 accumulation, large lane-dense F tiles,
        # bf16 handoff
        h = fc_pallas(x.astype(jnp.bfloat16), self.W_fc_bf16,
                      self.b_fc_2d, self.tile_f)                    # (B, 64*L) bf16
        # torch: x.view(B, 64, L) -> free reshape, kernel consumes NCW directly
        h = h.reshape(B, 64, L)                                     # (B, 64, L)
        halos = _build_halos(h, self.tl)                            # (B, n_t, 64, 4)
        # fused relu(deconv1) -> 2x nearest upsample -> sigmoid(deconv2)
        z2 = fused_conv_pallas(h, halos, self.W1T, self.b1_col,
                               self.W2T, self.b2_11, self.tl)       # (B, 2, L)
        # interleave even/odd time samples -> (B, 1, 2L) NCW (tiny final tensor)
        return z2.transpose(0, 2, 1).reshape(B, 1, 2 * L)


# -----------------------------------------------------------------------------
# Pure-JAX float32 reference (NCW, like PyTorch) for correctness checking
# -----------------------------------------------------------------------------
def ref_forward(x, W_fc, b_fc, W1, b1, W2, b2, L):
    B = x.shape[0]
    h = (x @ W_fc + b_fc).reshape(B, 64, L)

    def convt(inp, W, bias):
        T = inp.shape[2]
        p = jnp.pad(inp, ((0, 0), (0, 0), (1, 1)))
        out = sum(
            jnp.einsum('bct,cd->bdt', p[:, :, 2 - k:2 - k + T], W[:, :, k])
            for k in range(3)
        )
        return out + bias[None, :, None]

    y = jax.nn.relu(convt(h, W1, b1))
    u = jnp.repeat(y, 2, axis=2)                 # nearest 2x upsample
    return jax.nn.sigmoid(convt(u, W2, b2))


if __name__ == "__main__":
    key = jax.random.PRNGKey(0)
    k_in, k_par = jax.random.split(key)
    model = ClassicalDecoderPallas(output_length=16, latent_dim=32, key=k_par)
    B = 2
    x = jax.random.normal(k_in, (B, model.latent_dim), jnp.float32)

    out = jax.jit(lambda a: model(a))(x)
    out = jax.block_until_ready(out)

    ref = ref_forward(x, model.W_fc, model.b_fc, model.W1, model.b1,
                      model.W2, model.b2, model.L)

    assert out.shape == (B, 1, 2 * model.L), out.shape
    if not np.allclose(np.asarray(out), np.asarray(ref), atol=5e-3, rtol=5e-3):
        raise AssertionError(
            "mismatch vs f32 reference: max abs err = %g"
            % float(jnp.max(jnp.abs(out - ref)))
        )
    print("KERNEL_OK")
</pallas_src>

<mosaic_0001>
module attributes {stable_mosaic.version = 11 : i64} {
  func.func @_fc_kernel(%arg0: i32, %arg1: memref<2x32xbf16, #tpu.memory_space<vmem>>, %arg2: memref<32x2560xbf16, #tpu.memory_space<vmem>>, %arg3: memref<1x2560xf32, #tpu.memory_space<vmem>>, %arg4: memref<2x2560xbf16, #tpu.memory_space<vmem>>) attributes {dimension_semantics = [#tpu.dimension_semantics<parallel>], iteration_bounds = array<i64: 1>, scalar_prefetch = 0 : i64, scratch_operands = 0 : i64, tpu.core_type = #tpu.core_type<tc>, window_params = [{pipeline_mode = #tpu.pipeline_mode<synchronous>, transform_indices = @transform_0, window_bounds = array<i64: 2, 32>}, {transform_indices = @transform_1, window_bounds = array<i64: 32, 2560>}, {transform_indices = @transform_2, window_bounds = array<i64: 1, 2560>}, {transform_indices = @transform_3, window_bounds = array<i64: 2, 2560>}]} {
    %c0 = arith.constant 0 : index
    %c0_0 = arith.constant 0 : index
    %0 = vector.load %arg1[%c0, %c0_0] : memref<2x32xbf16, #tpu.memory_space<vmem>>, vector<2x32xbf16>
    %c0_1 = arith.constant 0 : index
    %c0_2 = arith.constant 0 : index
    %1 = vector.load %arg2[%c0_1, %c0_2] : memref<32x2560xbf16, #tpu.memory_space<vmem>>, vector<32x2560xbf16>
    %cst = arith.constant dense<0.000000e+00> : vector<2x2560xf32>
    %2 = tpu.matmul %0, %1, %cst {dimension_numbers = #tpu.dot_dimension_numbers<[1], [0], [0], [1], [0, 0, 1, 1], [], []>} : vector<2x32xbf16>, vector<32x2560xbf16>, vector<2x2560xf32> -> vector<2x2560xf32>
    %c0_3 = arith.constant 0 : index
    %c0_4 = arith.constant 0 : index
    %3 = vector.load %arg3[%c0_3, %c0_4] : memref<1x2560xf32, #tpu.memory_space<vmem>>, vector<1x2560xf32>
    %4 = vector.broadcast %3 : vector<1x2560xf32> to vector<2x2560xf32>
    %5 = arith.addf %2, %4 : vector<2x2560xf32>
    %6 = arith.truncf %5 : vector<2x2560xf32> to vector<2x2560xbf16>
    %c0_5 = arith.constant 0 : index
    %c0_6 = arith.constant 0 : index
    %7 = vector.load %arg4[%c0_5, %c0_6] : memref<2x2560xbf16, #tpu.memory_space<vmem>>, vector<2x2560xbf16>
    tpu.vector_store %arg4[%c0_5, %c0_6], %6 {strides = array<i32>} : memref<2x2560xbf16, #tpu.memory_space<vmem>>, vector<2x2560xbf16>,
    return
  }
  func.func @transform_0(%arg0: i32) -> (i32, i32) {
    %c0_i32 = arith.constant 0 : i32
    %c0_i32_0 = arith.constant 0 : i32
    %c0_i32_1 = arith.constant 0 : i32
    return %c0_i32, %c0_i32_0 : i32, i32
  }
  func.func @transform_1(%arg0: i32) -> (i32, i32) {
    %c0_i32 = arith.constant 0 : i32
    %c0_i32_0 = arith.constant 0 : i32
    return %c0_i32, %arg0 : i32, i32
  }
  func.func @transform_2(%arg0: i32) -> (i32, i32) {
    %c0_i32 = arith.constant 0 : i32
    %c0_i32_0 = arith.constant 0 : i32
    return %c0_i32, %arg0 : i32, i32
  }
  func.func @transform_3(%arg0: i32) -> (i32, i32) {
    %c0_i32 = arith.constant 0 : i32
    %c0_i32_0 = arith.constant 0 : i32
    return %c0_i32, %arg0 : i32, i32
  }
}

module attributes {stable_mosaic.version = 11 : i64} {
  func.func @_fused_decoder_kernel(%arg0: i32, %arg1: i32, %arg2: memref<1x64x40xbf16, #tpu.memory_space<vmem>>, %arg3: memref<1x1x64x4xbf16, #tpu.memory_space<vmem>>, %arg4: memref<3x32x64xbf16, #tpu.memory_space<vmem>>, %arg5: memref<32x1xf32, #tpu.memory_space<vmem>>, %arg6: memref<3x32xf32, #tpu.memory_space<vmem>>, %arg7: memref<1x1xf32, #tpu.memory_space<vmem>>, %arg8: memref<1x2x40xf32, #tpu.memory_space<vmem>>, %arg9: memref<64x44xbf16, #tpu.memory_space<vmem>>) attributes {dimension_semantics = [#tpu.dimension_semantics<parallel>, #tpu.dimension_semantics<parallel>], iteration_bounds = array<i64: 2, 1>, scalar_prefetch = 0 : i64, scratch_operands = 1 : i64, tpu.core_type = #tpu.core_type<tc>, window_params = [{transform_indices = @transform_0, window_bounds = array<i64: 1, 64, 40>}, {transform_indices = @transform_1, window_bounds = array<i64: 1, 1, 64, 4>}, {pipeline_mode = #tpu.pipeline_mode<synchronous>, transform_indices = @transform_2, window_bounds = array<i64: 3, 32, 64>}, {pipeline_mode = #tpu.pipeline_mode<synchronous>, transform_indices = @transform_3, window_bounds = array<i64: 32, 1>}, {pipeline_mode = #tpu.pipeline_mode<synchronous>, transform_indices = @transform_4, window_bounds = array<i64: 3, 32>}, {pipeline_mode = #tpu.pipeline_mode<synchronous>, transform_indices = @transform_5, window_bounds = array<i64: 1, 1>}, {transform_indices = @transform_6, window_bounds = array<i64: 1, 2, 40>}]} {
    %c40_i32 = arith.constant 40 : i32
    %0 = arith.muli %arg1, %c40_i32 : i32
    %c0 = arith.constant 0 : index
    %c0_0 = arith.constant 0 : index
    %c0_1 = arith.constant 0 : index
    %c0_2 = arith.constant 0 : index
    %1 = vector.load %arg3[%c0, %c0_0, %c0_1, %c0_2] : memref<1x1x64x4xbf16, #tpu.memory_space<vmem>>, vector<1x1x64x2xbf16>
    %2 = vector.shape_cast %1 : vector<1x1x64x2xbf16> to vector<64x2xbf16>
    %c0_3 = arith.constant 0 : index
    %c0_4 = arith.constant 0 : index
    %3 = vector.load %arg9[%c0_3, %c0_4] : memref<64x44xbf16, #tpu.memory_space<vmem>>, vector<64x2xbf16>
    tpu.vector_store %arg9[%c0_3, %c0_4], %2 {strides = array<i32>} : memref<64x44xbf16, #tpu.memory_space<vmem>>, vector<64x2xbf16>,
    %c0_5 = arith.constant 0 : index
    %c0_6 = arith.constant 0 : index
    %c0_7 = arith.constant 0 : index
    %4 = vector.load %arg2[%c0_5, %c0_6, %c0_7] : memref<1x64x40xbf16, #tpu.memory_space<vmem>>, vector<1x64x40xbf16>
    %5 = vector.shape_cast %4 : vector<1x64x40xbf16> to vector<64x40xbf16>
    %c0_8 = arith.constant 0 : index
    %c2 = arith.constant 2 : index
    %6 = vector.load %arg9[%c0_8, %c2] : memref<64x44xbf16, #tpu.memory_space<vmem>>, vector<64x40xbf16>
    tpu.vector_store %arg9[%c0_8, %c2], %5 {strides = array<i32>} : memref<64x44xbf16, #tpu.memory_space<vmem>>, vector<64x40xbf16>,
    %c0_9 = arith.constant 0 : index
    %c0_10 = arith.constant 0 : index
    %c0_11 = arith.constant 0 : index
    %c2_12 = arith.constant 2 : index
    %7 = vector.load %arg3[%c0_9, %c0_10, %c0_11, %c2_12] : memref<1x1x64x4xbf16, #tpu.memory_space<vmem>>, vector<1x1x64x2xbf16>
    %8 = vector.shape_cast %7 : vector<1x1x64x2xbf16> to vector<64x2xbf16>
    %c0_13 = arith.constant 0 : index
    %c42 = arith.constant 42 : index
    %9 = vector.load %arg9[%c0_13, %c42] : memref<64x44xbf16, #tpu.memory_space<vmem>>, vector<64x2xbf16>
    tpu.vector_store %arg9[%c0_13, %c42], %8 {strides = array<i32>} : memref<64x44xbf16, #tpu.memory_space<vmem>>, vector<64x2xbf16>,
    %c0_14 = arith.constant 0 : index
    %c0_15 = arith.constant 0 : index
    %10 = vector.load %arg9[%c0_14, %c0_15] : memref<64x44xbf16, #tpu.memory_space<vmem>>, vector<64x44xbf16>
    %c0_16 = arith.constant 0 : index
    %c0_17 = arith.constant 0 : index
    %c0_18 = arith.constant 0 : index
    %11 = vector.load %arg4[%c0_16, %c0_17, %c0_18] : memref<3x32x64xbf16, #tpu.memory_space<vmem>>, vector<1x32x64xbf16>
    %12 = vector.shape_cast %11 : vector<1x32x64xbf16> to vector<32x64xbf16>
    %13 = vector.extract_strided_slice %10 {offsets = [0, 2], sizes = [64, 42], strides = [1, 1]} : vector<64x44xbf16> to vector<64x42xbf16>
    %cst = arith.constant dense<0.000000e+00> : vector<32x42xf32>
    %14 = tpu.matmul %12, %13, %cst {dimension_numbers = #tpu.dot_dimension_numbers<[1], [0], [0], [1], [0, 0, 1, 1], [], []>} : vector<32x64xbf16>, vector<64x42xbf16>, vector<32x42xf32> -> vector<32x42xf32>
    %c1 = arith.constant 1 : index
    %c0_19 = arith.constant 0 : index
    %c0_20 = arith.constant 0 : index
    %15 = vector.load %arg4[%c1, %c0_19, %c0_20] : memref<3x32x64xbf16, #tpu.memory_space<vmem>>, vector<1x32x64xbf16>
    %16 = vector.shape_cast %15 : vector<1x32x64xbf16> to vector<32x64xbf16>
    %17 = vector.extract_strided_slice %10 {offsets = [0, 1], sizes = [64, 42], strides = [1, 1]} : vector<64x44xbf16> to vector<64x42xbf16>
    %cst_21 = arith.constant dense<0.000000e+00> : vector<32x42xf32>
    %18 = tpu.matmul %16, %17, %cst_21 {dimension_numbers = #tpu.dot_dimension_numbers<[1], [0], [0], [1], [0, 0, 1, 1], [], []>} : vector<32x64xbf16>, vector<64x42xbf16>, vector<32x42xf32> -> vector<32x42xf32>
    %19 = arith.addf %14, %18 : vector<32x42xf32>
    %c2_22 = arith.constant 2 : index
    %c0_23 = arith.constant 0 : index
    %c0_24 = arith.constant 0 : index
    %20 = vector.load %arg4[%c2_22, %c0_23, %c0_24] : memref<3x32x64xbf16, #tpu.memory_space<vmem>>, vector<1x32x64xbf16>
    %21 = vector.shape_cast %20 : vector<1x32x64xbf16> to vector<32x64xbf16>
    %22 = vector.extract_strided_slice %10 {offsets = [0, 0], sizes = [64, 42], strides = [1, 1]} : vector<64x44xbf16> to vector<64x42xbf16>
    %cst_25 = arith.constant dense<0.000000e+00> : vector<32x42xf32>
    %23 = tpu.matmul %21, %22, %cst_25 {dimension_numbers = #tpu.dot_dimension_numbers<[1], [0], [0], [1], [0, 0, 1, 1], [], []>} : vector<32x64xbf16>, vector<64x42xbf16>, vector<32x42xf32> -> vector<32x42xf32>
    %24 = arith.addf %19, %23 : vector<32x42xf32>
    %c0_26 = arith.constant 0 : index
    %c0_27 = arith.constant 0 : index
    %25 = vector.load %arg5[%c0_26, %c0_27] : memref<32x1xf32, #tpu.memory_space<vmem>>, vector<32x1xf32>
    %26 = vector.broadcast %25 : vector<32x1xf32> to vector<32x42xf32>
    %27 = arith.addf %24, %26 : vector<32x42xf32>
    %cst_28 = arith.constant 0.000000e+00 : f32
    %28 = vector.broadcast %cst_28 : f32 to vector<32x42xf32>
    %29 = arith.maximumf %27, %28 : vector<32x42xf32>
    %c0_29 = arith.constant 0 : index
    %c0_30 = arith.constant 0 : index
    %30 = vector.load %arg6[%c0_29, %c0_30] : memref<3x32xf32, #tpu.memory_space<vmem>>, vector<3x32xf32>
    %cst_31 = arith.constant dense<0.000000e+00> : vector<3x42xf32>
    %31 = tpu.matmul %30, %29, %cst_31 {dimension_numbers = #tpu.dot_dimension_numbers<[1], [0], [0], [1], [0, 0, 1, 1], [], []>} : vector<3x32xf32>, vector<32x42xf32>, vector<3x42xf32> -> vector<3x42xf32>
    %32 = tpu.iota {dimensions = array<i32: 1>} : vector<1x42xi32>
    %c1_i32 = arith.constant 1 : i32
    %33 = arith.subi %0, %c1_i32 : i32
    %34 = vector.broadcast %33 : i32 to vector<1x42xi32>
    %35 = arith.addi %32, %34 : vector<1x42xi32>
    %c0_i32 = arith.constant 0 : i32
    %36 = vector.broadcast %c0_i32 : i32 to vector<1x42xi32>
    %37 = arith.cmpi sge, %35, %36 : vector<1x42xi32>
    %c40_i32_32 = arith.constant 40 : i32
    %38 = vector.broadcast %c40_i32_32 : i32 to vector<1x42xi32>
    %39 = arith.cmpi slt, %35, %38 : vector<1x42xi32>
    %40 = arith.andi %37, %39 : vector<1x42xi1>
    %cst_33 = arith.constant 0.000000e+00 : f32
    %41 = vector.shape_cast %40 : vector<1x42xi1> to vector<1x42xi1>
    %42 = vector.broadcast %41 : vector<1x42xi1> to vector<3x42xi1>
    %43 = vector.broadcast %cst_33 : f32 to vector<3x42xf32>
    %44 = arith.select %42, %31, %43 : vector<3x42xi1>, vector<3x42xf32>
    %c0_34 = arith.constant 0 : index
    %c0_35 = arith.constant 0 : index
    %45 = vector.load %arg7[%c0_34, %c0_35] : memref<1x1xf32, #tpu.memory_space<vmem>>, vector<1x1xf32>
    %46 = vector.extract_strided_slice %44 {offsets = [0, 1], sizes = [1, 40], strides = [1, 1]} : vector<3x42xf32> to vector<1x40xf32>
    %47 = vector.extract_strided_slice %44 {offsets = [1, 1], sizes = [1, 40], strides = [1, 1]} : vector<3x42xf32> to vector<1x40xf32>
    %48 = arith.addf %46, %47 : vector<1x40xf32>
    %49 = vector.extract_strided_slice %44 {offsets = [2, 0], sizes = [1, 40], strides = [1, 1]} : vector<3x42xf32> to vector<1x40xf32>
    %50 = arith.addf %48, %49 : vector<1x40xf32>
    %51 = vector.broadcast %45 : vector<1x1xf32> to vector<1x40xf32>
    %52 = arith.addf %50, %51 : vector<1x40xf32>
    %53 = vector.extract_strided_slice %44 {offsets = [0, 2], sizes = [1, 40], strides = [1, 1]} : vector<3x42xf32> to vector<1x40xf32>
    %54 = vector.extract_strided_slice %44 {offsets = [1, 1], sizes = [1, 40], strides = [1, 1]} : vector<3x42xf32> to vector<1x40xf32>
    %55 = arith.addf %53, %54 : vector<1x40xf32>
    %56 = vector.extract_strided_slice %44 {offsets = [2, 1], sizes = [1, 40], strides = [1, 1]} : vector<3x42xf32> to vector<1x40xf32>
    %57 = arith.addf %55, %56 : vector<1x40xf32>
    %58 = vector.broadcast %45 : vector<1x1xf32> to vector<1x40xf32>
    %59 = arith.addf %57, %58 : vector<1x40xf32>
    %60 = tpu.concatenate %52, %59 in 0 : vector<1x40xf32>, vector<1x40xf32> -> vector<2x40xf32>
    %61 = arith.negf %60 : vector<2x40xf32>
    %62 = math.exp %61 : vector<2x40xf32>
    %cst_36 = arith.constant 1.000000e+00 : f32
    %63 = vector.broadcast %cst_36 : f32 to vector<2x40xf32>
    %64 = arith.addf %63, %62 : vector<2x40xf32>
    %65 = arith.divf %63, %64 : vector<2x40xf32>
    %c0_37 = arith.constant 0 : index
    %c0_38 = arith.constant 0 : index
    %c0_39 = arith.constant 0 : index
    %66 = vector.load %arg8[%c0_37, %c0_38, %c0_39] : memref<1x2x40xf32, #tpu.memory_space<vmem>>, vector<1x2x40xf32>
    %67 = vector.shape_cast %66 : vector<1x2x40xf32> to vector<2x40xf32>
    %68 = vector.shape_cast %65 : vector<2x40xf32> to vector<1x2x40xf32>
    tpu.vector_store %arg8[%c0_37, %c0_38, %c0_39], %68 {strides = array<i32>} : memref<1x2x40xf32, #tpu.memory_space<vmem>>, vector<1x2x40xf32>,
    return
  }
  func.func @transform_0(%arg0: i32, %arg1: i32) -> (i32, i32, i32) {
    %c0_i32 = arith.constant 0 : i32
    %c0_i32_0 = arith.constant 0 : i32
    return %arg0, %c0_i32, %arg1 : i32, i32, i32
  }
  func.func @transform_1(%arg0: i32, %arg1: i32) -> (i32, i32, i32, i32) {
    %c0_i32 = arith.constant 0 : i32
    %c0_i32_0 = arith.constant 0 : i32
    %c0_i32_1 = arith.constant 0 : i32
    return %arg0, %arg1, %c0_i32, %c0_i32_0 : i32, i32, i32, i32
  }
  func.func @transform_2(%arg0: i32, %arg1: i32) -> (i32, i32, i32) {
    %c0_i32 = arith.constant 0 : i32
    %c0_i32_0 = arith.constant 0 : i32
    %c0_i32_1 = arith.constant 0 : i32
    %c0_i32_2 = arith.constant 0 : i32
    return %c0_i32, %c0_i32_0, %c0_i32_1 : i32, i32, i32
  }
  func.func @transform_3(%arg0: i32, %arg1: i32) -> (i32, i32) {
    %c0_i32 = arith.constant 0 : i32
    %c0_i32_0 = arith.constant 0 : i32
    %c0_i32_1 = arith.constant 0 : i32
    return %c0_i32, %c0_i32_0 : i32, i32
  }
  func.func @transform_4(%arg0: i32, %arg1: i32) -> (i32, i32) {
    %c0_i32 = arith.constant 0 : i32
    %c0_i32_0 = arith.constant 0 : i32
    %c0_i32_1 = arith.constant 0 : i32
    return %c0_i32, %c0_i32_0 : i32, i32
  }
  func.func @transform_5(%arg0: i32, %arg1: i32) -> (i32, i32) {
    %c0_i32 = arith.constant 0 : i32
    %c0_i32_0 = arith.constant 0 : i32
    %c0_i32_1 = arith.constant 0 : i32
    return %c0_i32, %c0_i32_0 : i32, i32
  }
  func.func @transform_6(%arg0: i32, %arg1: i32) -> (i32, i32, i32) {
    %c0_i32 = arith.constant 0 : i32
    %c0_i32_0 = arith.constant 0 : i32
    return %arg0, %c0_i32, %arg1 : i32, i32, i32
  }
}

</mosaic_0001>

<llo_original>
// kernel: _lambda_.3
$region0: #{_lambda_.3}
  #allocation0 [shape = 'u32[]', space=smem, size = 0x4, offset = 0x4, fixed_abs, tag = 'smem constant byte address 0x4 - core index']
  #allocation1 [shape = 'u32[72,128]{1,0:T(1,128)}', space=vmem, size = 0x9000, scoped, tag = 'internal scratch']
  #allocation2 [shape = 'bf16[64,44]{1,0:T(8,128)(2,1)}', space=vmem, size = 0x4000, scoped, tag = 'scratch operand']
  #allocation3 [shape = 'f32[1,1]{1,0:T(1,128)S(1)}', space=vmem, size = 0x200, scoped, tag = 'scoped memory for _lambda_.3']
  %s0 = inlined_call_operand.vmem [shape: bf16[2,64,40], index: 0, kind: input, shape index: {}]
  %s1 = inlined_call_operand.vmem [shape: bf16[2,1,64,4], index: 1, kind: input, shape index: {}]
  %s2 = inlined_call_operand.vmem [shape: bf16[3,32,64], index: 2, kind: input, shape index: {}]
  %s3 = inlined_call_operand.vmem [shape: f32[32,1], index: 3, kind: input, shape index: {}]
  %s4 = inlined_call_operand.vmem [shape: f32[3,32], index: 4, kind: input, shape index: {}]
  %s5 = inlined_call_operand.<no memory space> [shape: f32[1,1], index: 5, kind: input, shape index: {}]
  %s6 = inlined_call_operand.vmem [shape: f32[2,2,40], index: 6, kind: output, shape index: {}]
  %s7 = sld [smem:[#allocation0]]
  $region57: #{_lambda_.3} parent=0
    _
  %s9 = ssub.s32 1, %s7
  %s10 = scalar_select 0, %s9, %s7
  %v11 = vstv %s5
  %12 = vst [vmem:[#allocation3] sm:$0x1] %v11
  loop: start=0, step=1, limit=4
  $region2: #{_lambda_.3} parent=0 // loop_pre_header
    _
  $region3: #{_lambda_.3} parent=0 // loop_header
    %s14 = sphi 0, %s18
    %p15 = scmp.ge.s32.totalorder %s14, 4
    %s21 = sphi 0, %s33
    %s22 = sphi 0, %s29
    %s23 = sphi 0, %s21
    %s24 = sphi 0, %s22
    %s25 = sphi 0, %s23
    %s26 = sphi 0, %s24
    %s38 = sphi 0, %s40
    %s41 = sphi 0, %s38
    %s42 = sphi 0, %s41
    %s58 = sphi 0, %s42
    %s66 = sphi 0, %s68
    %s69 = sphi 0, %s66
    %s70 = sphi 0, %s69
    %s86 = sphi 0, %s70
    %s90 = sphi 0, %s90
    %s92 = sphi 0, %s90
    %s93 = sphi 0, %s92
    %s107 = sphi 0, %s93
    %s111 = sphi 0, %s111
    %s113 = sphi 0, %s111
    %s114 = sphi 0, %s113
    %s128 = sphi 0, %s114
    %s132 = sphi 0, %s132
    %s134 = sphi 0, %s132
    %s135 = sphi 0, %s134
    %s149 = sphi 0, %s135
    %s153 = sphi 0, %s153
    %s155 = sphi 0, %s153
    %s156 = sphi 0, %s155
    %s170 = sphi 0, %s156
    %s178 = sphi 0, %s180
    %s181 = sphi 0, %s178
    %s182 = sphi 0, %s181
    %s198 = sphi 0, %s182
  $region4: #{_lambda_.3} parent=0 // loop_header_branch
    %17 = sbr.rel (%p15) target = $region8
  $region5: #{_lambda_.3} parent=0 // loop_body
    %s19 = ssub.s32 %s14, 1
    %s20 = ssub.s32 %s14, 2
    %s27 = sadd.s32 1, %s22
    %p28 = scmp.ge.s32.totalorder %s27, 1
    %s29 = scalar_select %p28, 0, %s27
    %s30 = sadd.s32 1, %s21
    %s31 = scalar_select %p28, %s30, %s21
    %p32 = scmp.ge.s32.totalorder %s31, 2
    %s33 = scalar_select %p32, 0, %s31
    %s34 = ssub.s32 %s21, %s33
    %s35 = ssub.s32 %s22, %s29
    %s36 = sor.u32 %s34, %s35
    %p37 = scmp.eq.s32.totalorder %s36, 0
    %s39 = sadd.s32 %s38, 1
    %s40 = scalar_select %p37, %s38, %s39
    %p43 = pneg %p37
    %p44 = scmp.eq.s32.totalorder %s14, 1
    %p45 = por %p43, %p44
    %p46 = scmp.ne.s32.totalorder %s38, %s41
    %p47 = scmp.eq.s32.totalorder %s14, 0
    %p48 = por %p46, %p47
    %p49 = scmp.ne.s32.totalorder %s38, %s41
    %p50 = scmp.eq.s32.totalorder %s19, 1
    %p51 = por %p49, %p50
    %p52 = scmp.ne.s32.totalorder %s41, %s42
    %p53 = scmp.eq.s32.totalorder %s19, 0
    %p54 = por %p52, %p53
    %p55 = scmp.ne.s32.totalorder %s41, %s42
    %p56 = scmp.eq.s32.totalorder %s20, 1
    %p57 = por %p55, %p56
    %p59 = scmp.ne.s32.totalorder %s42, %s58
    %p60 = scmp.eq.s32.totalorder %s20, 0
    %p61 = por %p59, %p60
    %s62 = ssub.s32 %s21, %s33
    %s63 = ssub.s32 %s22, %s29
    %s64 = sor.u32 %s62, %s63
    %p65 = scmp.eq.s32.totalorder %s64, 0
    %s67 = sadd.s32 %s66, 1
    %s68 = scalar_select %p65, %s66, %s67
    %p71 = pneg %p65
    %p72 = scmp.eq.s32.totalorder %s14, 1
    %p73 = por %p71, %p72
    %p74 = scmp.ne.s32.totalorder %s66, %s69
    %p75 = scmp.eq.s32.totalorder %s14, 0
    %p76 = por %p74, %p75
    %p77 = scmp.ne.s32.totalorder %s66, %s69
    %p78 = scmp.eq.s32.totalorder %s19, 1
    %p79 = por %p77, %p78
    %p80 = scmp.ne.s32.totalorder %s69, %s70
    %p81 = scmp.eq.s32.totalorder %s19, 0
    %p82 = por %p80, %p81
    %p83 = scmp.ne.s32.totalorder %s69, %s70
    %p84 = scmp.eq.s32.totalorder %s20, 1
    %p85 = por %p83, %p84
    %p87 = scmp.ne.s32.totalorder %s70, %s86
    %p88 = scmp.eq.s32.totalorder %s20, 0
    %p89 = por %p87, %p88
    %s91 = sadd.s32 %s90, 1
    %p94 = scmp.eq.s32.totalorder %s14, 1
    %p95 = scmp.ne.s32.totalorder %s90, %s92
    %p96 = scmp.eq.s32.totalorder %s14, 0
    %p97 = por %p95, %p96
    %p98 = scmp.ne.s32.totalorder %s90, %s92
    %p99 = scmp.eq.s32.totalorder %s19, 1
    %p100 = por %p98, %p99
    %p101 = scmp.ne.s32.totalorder %s92, %s93
    %p102 = scmp.eq.s32.totalorder %s19, 0
    %p103 = por %p101, %p102
    %p104 = scmp.ne.s32.totalorder %s92, %s93
    %p105 = scmp.eq.s32.totalorder %s20, 1
    %p106 = por %p104, %p105
    %p108 = scmp.ne.s32.totalorder %s93, %s107
    %p109 = scmp.eq.s32.totalorder %s20, 0
    %p110 = por %p108, %p109
    %s112 = sadd.s32 %s111, 1
    %p115 = scmp.eq.s32.totalorder %s14, 1
    %p116 = scmp.ne.s32.totalorder %s111, %s113
    %p117 = scmp.eq.s32.totalorder %s14, 0
    %p118 = por %p116, %p117
    %p119 = scmp.ne.s32.totalorder %s111, %s113
    %p120 = scmp.eq.s32.totalorder %s19, 1
    %p121 = por %p119, %p120
    %p122 = scmp.ne.s32.totalorder %s113, %s114
    %p123 = scmp.eq.s32.totalorder %s19, 0
    %p124 = por %p122, %p123
    %p125 = scmp.ne.s32.totalorder %s113, %s114
    %p126 = scmp.eq.s32.totalorder %s20, 1
    %p127 = por %p125, %p126
    %p129 = scmp.ne.s32.totalorder %s114, %s128
    %p130 = scmp.eq.s32.totalorder %s20, 0
    %p131 = por %p129, %p130
    %s133 = sadd.s32 %s132, 1
    %p136 = scmp.eq.s32.totalorder %s14, 1
    %p137 = scmp.ne.s32.totalorder %s132, %s134
    %p138 = scmp.eq.s32.totalorder %s14, 0
    %p139 = por %p137, %p138
    %p140 = scmp.ne.s32.totalorder %s132, %s134
    %p141 = scmp.eq.s32.totalorder %s19, 1
    %p142 = por %p140, %p141
    %p143 = scmp.ne.s32.totalorder %s134, %s135
    %p144 = scmp.eq.s32.totalorder %s19, 0
    %p145 = por %p143, %p144
    %p146 = scmp.ne.s32.totalorder %s134, %s135
    %p147 = scmp.eq.s32.totalorder %s20, 1
    %p148 = por %p146, %p147
    %p150 = scmp.ne.s32.totalorder %s135, %s149
    %p151 = scmp.eq.s32.totalorder %s20, 0
    %p152 = por %p150, %p151
    %s154 = sadd.s32 %s153, 1
    %p157 = scmp.eq.s32.totalorder %s14, 1
    %p158 = scmp.ne.s32.totalorder %s153, %s155
    %p159 = scmp.eq.s32.totalorder %s14, 0
    %p160 = por %p158, %p159
    %p161 = scmp.ne.s32.totalorder %s153, %s155
    %p162 = scmp.eq.s32.totalorder %s19, 1
    %p163 = por %p161, %p162
    %p164 = scmp.ne.s32.totalorder %s155, %s156
    %p165 = scmp.eq.s32.totalorder %s19, 0
    %p166 = por %p164, %p165
    %p167 = scmp.ne.s32.totalorder %s155, %s156
    %p168 = scmp.eq.s32.totalorder %s20, 1
    %p169 = por %p167, %p168
    %p171 = scmp.ne.s32.totalorder %s156, %s170
    %p172 = scmp.eq.s32.totalorder %s20, 0
    %p173 = por %p171, %p172
    %s174 = ssub.s32 %s21, %s33
    %s175 = ssub.s32 %s22, %s29
    %s176 = sor.u32 %s174, %s175
    %p177 = scmp.eq.s32.totalorder %s176, 0
    %s179 = sadd.s32 %s178, 1
    %s180 = scalar_select %p177, %s178, %s179
    %p183 = pneg %p177
    %p184 = scmp.eq.s32.totalorder %s14, 1
    %p185 = por %p183, %p184
    %p186 = scmp.ne.s32.totalorder %s178, %s181
    %p187 = scmp.eq.s32.totalorder %s14, 0
    %p188 = por %p186, %p187
    %p189 = scmp.ne.s32.totalorder %s178, %s181
    %p190 = scmp.eq.s32.totalorder %s19, 1
    %p191 = por %p189, %p190
    %p192 = scmp.ne.s32.totalorder %s181, %s182
    %p193 = scmp.eq.s32.totalorder %s19, 0
    %p194 = por %p192, %p193
    %p195 = scmp.ne.s32.totalorder %s181, %s182
    %p196 = scmp.eq.s32.totalorder %s20, 1
    %p197 = por %p195, %p196
    %p199 = scmp.ne.s32.totalorder %s182, %s198
    %p200 = scmp.eq.s32.totalorder %s20, 0
    %p201 = por %p199, %p200
    %p202 = scmp.le.s32.totalorder 1, %s14
    %p203 = scmp.lt.s32.totalorder %s14, 3
    %p204 = pnand %p202, %p203
    %p205 = pneg %p204
    // Predicated region
    $region9: #{_lambda_.3} parent=5 // pred_check
      _
    $region10: #{_lambda_.3} parent=5 // pred_check_branch
      %207 = sbr.rel (%p204) target = $region12
    $region11: #{_lambda_.3} parent=5 // pred_region
      %s208 = ssub.s32 %s14, 1
      // Predicated region
      $region13: #{_lambda_.3} parent=11 // pred_check
        %p209 = pneg %p103
      $region14: #{_lambda_.3} parent=11 // pred_check_branch
        %211 = sbr.rel (%p209) target = $region16
      $region15: #{_lambda_.3} parent=11 // pred_region
        _
      $region16: #{_lambda_.3} parent=11 // pred_fallthru
        _
      // Predicated region
      $region17: #{_lambda_.3} parent=11 // pred_check
        %p212 = pneg %p124
      $region18: #{_lambda_.3} parent=11 // pred_check_branch
        %214 = sbr.rel (%p212) target = $region20
      $region19: #{_lambda_.3} parent=11 // pred_region
        _
      $region20: #{_lambda_.3} parent=11 // pred_fallthru
        _
      // Predicated region
      $region21: #{_lambda_.3} parent=11 // pred_check
        %p215 = pneg %p145
      $region22: #{_lambda_.3} parent=11 // pred_check_branch
        %217 = sbr.rel (%p215) target = $region24
      $region23: #{_lambda_.3} parent=11 // pred_region
        _
      $region24: #{_lambda_.3} parent=11 // pred_fallthru
        _
      // Predicated region
      $region25: #{_lambda_.3} parent=11 // pred_check
        %p218 = pneg %p166
      $region26: #{_lambda_.3} parent=11 // pred_check_branch
        %220 = sbr.rel (%p218) target = $region28
      $region27: #{_lambda_.3} parent=11 // pred_region
        _
      $region28: #{_lambda_.3} parent=11 // pred_fallthru
        _
    $region12: #{_lambda_.3} parent=5 // pred_fallthru
      _
    %p221 = scmp.lt.s32.totalorder %s14, 2
    // Predicated region
    $region29: #{_lambda_.3} parent=5 // pred_check
      %p222 = pneg %p221
    $region30: #{_lambda_.3} parent=5 // pred_check_branch
      %224 = sbr.rel (%p222) target = $region32
    $region31: #{_lambda_.3} parent=5 // pred_region
      // Predicated region
      $region33: #{_lambda_.3} parent=31 // pred_check
        %p225 = pneg %p48
      $region34: #{_lambda_.3} parent=31 // pred_check_branch
        %227 = sbr.rel (%p225) target = $region36
      $region35: #{_lambda_.3} parent=31 // pred_region
        %p228 = scmp.lt.s32.totalorder %s21, 1
        %s229 = scalar_select %p228, %s21, 1
        %p230 = scmp.lt.s32.totalorder %s22, 0
        %s231 = scalar_select %p230, %s22, 0
        %s232 = smul.addr %s229, 8
        %s233 = sadd.s32 %s231, %s232
        %s234 = smul.addr %s233, 4
        %s235 = scalar_lea.vmem %s0, %s234
      $region36: #{_lambda_.3} parent=31 // pred_fallthru
        _
      // Predicated region
      $region37: #{_lambda_.3} parent=31 // pred_check
        %p236 = pneg %p76
      $region38: #{_lambda_.3} parent=31 // pred_check_branch
        %238 = sbr.rel (%p236) target = $region40
      $region39: #{_lambda_.3} parent=31 // pred_region
        %p239 = scmp.lt.s32.totalorder %s21, 1
        %s240 = scalar_select %p239, %s21, 1
        %p241 = scmp.lt.s32.totalorder %s22, 0
        %s242 = scalar_select %p241, %s22, 0
        %s243 = smul.addr %s242, 8
        %s244 = smul.addr %s240, 8
        %s245 = sadd.s32 %s243, %s244
        %s246 = smul.addr %s245, 4
        %s247 = scalar_lea.vmem %s1, %s246
      $region40: #{_lambda_.3} parent=31 // pred_fallthru
        _
    $region32: #{_lambda_.3} parent=5 // pred_fallthru
      _
    %p248 = scmp.le.s32.totalorder 1, %s14
    %p249 = scmp.lt.s32.totalorder %s14, 3
    %p250 = pnand %p248, %p249
    %p251 = pneg %p250
    // Predicated region
    $region41: #{_lambda_.3} parent=5 // pred_check
      _
    $region42: #{_lambda_.3} parent=5 // pred_check_branch
      %253 = sbr.rel (%p250) target = $region44
    $region43: #{_lambda_.3} parent=5 // pred_region
      %s254 = ssub.s32 %s14, 1
      %p255 = scmp.lt.s32.totalorder %s23, 1
      %s256 = scalar_select %p255, %s23, 1
      %p257 = scmp.lt.s32.totalorder %s24, 0
      %s258 = scalar_select %p257, %s24, 0
      %s259 = smul.addr %s256, 8
      %s260 = sadd.s32 %s258, %s259
      %s261 = smul.addr %s260, 4
      %s262 = scalar_lea.vmem %s0, %s261
      %p263 = pneg %p54
      %p264 = pneg %p51
      %p265 = scmp.lt.s32.totalorder %s23, 1
      %s266 = scalar_select %p265, %s23, 1
      %p267 = scmp.lt.s32.totalorder %s24, 0
      %s268 = scalar_select %p267, %s24, 0
      %s269 = smul.addr %s268, 8
      %s270 = smul.addr %s266, 8
      %s271 = sadd.s32 %s269, %s270
      %s272 = smul.addr %s271, 4
      %s273 = scalar_lea.vmem %s1, %s272
      %p274 = pneg %p82
      %p275 = pneg %p79
      %p276 = pneg %p103
      %p277 = pneg %p100
      %p278 = pneg %p124
      %p279 = pneg %p121
      %p280 = pneg %p145
      %p281 = pneg %p142
      %p282 = pneg %p166
      %p283 = pneg %p163
      %p284 = pneg %p194
      %p285 = pneg %p191
      %p286 = scmp.lt.s32.totalorder %s23, 1
      %s287 = scalar_select %p286, %s23, 1
      %p288 = scmp.lt.s32.totalorder %s24, 0
      %s289 = scalar_select %p288, %s24, 0
      %s290 = sadd.s32 %s289, %s287
      %s291 = smul.addr %s290, 2
      %s292 = scalar_lea.vmem %s6, %s291
      %p293 = scmp.lt.s32.totalorder %s23, 1
      %s294 = scalar_select %p293, %s23, 1
      %p295 = scmp.lt.s32.totalorder %s24, 0
      %s296 = scalar_select %p295, %s24, 0
      %s297 = smul.addr %s294, 8
      %s298 = sadd.s32 %s296, %s297
      %s299 = smul.addr %s298, 4
      %s300 = scalar_lea.vmem %s0, %s299
      %p301 = scmp.lt.s32.totalorder %s23, 1
      %s302 = scalar_select %p301, %s23, 1
      %p303 = scmp.lt.s32.totalorder %s24, 0
      %s304 = scalar_select %p303, %s24, 0
      %s305 = smul.addr %s304, 8
      %s306 = smul.addr %s302, 8
      %s307 = sadd.s32 %s305, %s306
      %s308 = smul.addr %s307, 4
      %s309 = scalar_lea.vmem %s1, %s308
      %p310 = scmp.lt.s32.totalorder %s23, 1
      %s311 = scalar_select %p310, %s23, 1
      %p312 = scmp.lt.s32.totalorder %s24, 0
      %s313 = scalar_select %p312, %s24, 0
      %s314 = sadd.s32 %s313, %s311
      %s315 = smul.addr %s314, 2
      %s316 = scalar_lea.vmem %s6, %s315
      %s318 = smul.u32 %s24, 40
      %v319 = vld [vmem:[%s309] sm:$0xf]
      %v320 = vld [vmem:[%s309 + $0x4] sm:$0xf]
      %v321 = vld [vmem:[%s309 + $0x8] sm:$0xf]
      %v322 = vld [vmem:[%s309 + $0xc] sm:$0xf]
      %v323 = vld [vmem:[%s309 + $0x10] sm:$0xf]
      %v324 = vld [vmem:[%s309 + $0x14] sm:$0xf]
      %v325 = vld [vmem:[%s309 + $0x18] sm:$0xf]
      %v326 = vld [vmem:[%s309 + $0x1c] sm:$0xf]
      %vm327 = vcmask 11264
      %328 = vst.msk [vmem:[#allocation2] sm:$0xf] %vm327, %v319
      %329 = vst.msk [vmem:[#allocation2 + $0x4] sm:$0xf] %vm327, %v320
      %330 = vst.msk [vmem:[#allocation2 + $0x8] sm:$0xf] %vm327, %v321
      %331 = vst.msk [vmem:[#allocation2 + $0xc] sm:$0xf] %vm327, %v322
      %332 = vst.msk [vmem:[#allocation2 + $0x10] sm:$0xf] %vm327, %v323
      %333 = vst.msk [vmem:[#allocation2 + $0x14] sm:$0xf] %vm327, %v324
      %334 = vst.msk [vmem:[#allocation2 + $0x18] sm:$0xf] %vm327, %v325
      %335 = vst.msk [vmem:[#allocation2 + $0x1c] sm:$0xf] %vm327, %v326
      %v336 = vld [vmem:[%s300] sm:$0xf]
      %v337 = vld [vmem:[%s300 + $0x4] sm:$0xf]
      %v338 = vld [vmem:[%s300 + $0x8] sm:$0xf]
      %v339 = vld [vmem:[%s300 + $0xc] sm:$0xf]
      %v340 = vld [vmem:[%s300 + $0x10] sm:$0xf]
      %v341 = vld [vmem:[%s300 + $0x14] sm:$0xf]
      %v342 = vld [vmem:[%s300 + $0x18] sm:$0xf]
      %v343 = vld [vmem:[%s300 + $0x1c] sm:$0xf]
      %352 = vrot.lane.b32.xlu0 %v336, 2
      %v353 = vpop.permute.xlu0 %352
      %354 = vrot.lane.b32.xlu0 %v337, 2
      %v355 = vpop.permute.xlu0 %354
      %356 = vrot.lane.b32.xlu0 %v338, 2
      %v357 = vpop.permute.xlu0 %356
      %358 = vrot.lane.b32.xlu0 %v339, 2
      %v359 = vpop.permute.xlu0 %358
      %360 = vrot.lane.b32.xlu0 %v340, 2
      %v361 = vpop.permute.xlu0 %360
      %362 = vrot.lane.b32.xlu0 %v341, 2
      %v363 = vpop.permute.xlu0 %362
      %364 = vrot.lane.b32.xlu0 %v342, 2
      %v365 = vpop.permute.xlu0 %364
      %366 = vrot.lane.b32.xlu0 %v343, 2
      %v367 = vpop.permute.xlu0 %366
      %vm376 = vcmask 338960
      %377 = vst.msk [vmem:[#allocation2] sm:$0xf] %vm376, %v353
      %378 = vst.msk [vmem:[#allocation2 + $0x4] sm:$0xf] %vm376, %v355
      %379 = vst.msk [vmem:[#allocation2 + $0x8] sm:$0xf] %vm376, %v357
      %380 = vst.msk [vmem:[#allocation2 + $0xc] sm:$0xf] %vm376, %v359
      %381 = vst.msk [vmem:[#allocation2 + $0x10] sm:$0xf] %vm376, %v361
      %382 = vst.msk [vmem:[#allocation2 + $0x14] sm:$0xf] %vm376, %v363
      %383 = vst.msk [vmem:[#allocation2 + $0x18] sm:$0xf] %vm376, %v365
      %384 = vst.msk [vmem:[#allocation2 + $0x1c] sm:$0xf] %vm376, %v367
      %v385 = vld [vmem:[%s309] sm:$0xf]
      %v386 = vld [vmem:[%s309 + $0x4] sm:$0xf]
      %v387 = vld [vmem:[%s309 + $0x8] sm:$0xf]
      %v388 = vld [vmem:[%s309 + $0xc] sm:$0xf]
      %v389 = vld [vmem:[%s309 + $0x10] sm:$0xf]
      %v390 = vld [vmem:[%s309 + $0x14] sm:$0xf]
      %v391 = vld [vmem:[%s309 + $0x18] sm:$0xf]
      %v392 = vld [vmem:[%s309 + $0x1c] sm:$0xf]
      %401 = vrot.lane.b32.xlu0 %v385, 40
      %v402 = vpop.permute.xlu0 %401
      %403 = vrot.lane.b32.xlu0 %v386, 40
      %v404 = vpop.permute.xlu0 %403
      %405 = vrot.lane.b32.xlu0 %v387, 40
      %v406 = vpop.permute.xlu0 %405
      %407 = vrot.lane.b32.xlu0 %v388, 40
      %v408 = vpop.permute.xlu0 %407
      %409 = vrot.lane.b32.xlu0 %v389, 40
      %v410 = vpop.permute.xlu0 %409
      %411 = vrot.lane.b32.xlu0 %v390, 40
      %v412 = vpop.permute.xlu0 %411
      %413 = vrot.lane.b32.xlu0 %v391, 40
      %v414 = vpop.permute.xlu0 %413
      %415 = vrot.lane.b32.xlu0 %v392, 40
      %v416 = vpop.permute.xlu0 %415
      %vm425 = vcmask 355664
      %426 = vst.msk [vmem:[#allocation2] sm:$0xf] %vm425, %v402
      %427 = vst.msk [vmem:[#allocation2 + $0x4] sm:$0xf] %vm425, %v404
      %428 = vst.msk [vmem:[#allocation2 + $0x8] sm:$0xf] %vm425, %v406
      %429 = vst.msk [vmem:[#allocation2 + $0xc] sm:$0xf] %vm425, %v408
      %430 = vst.msk [vmem:[#allocation2 + $0x10] sm:$0xf] %vm425, %v410
      %431 = vst.msk [vmem:[#allocation2 + $0x14] sm:$0xf] %vm425, %v412
      %432 = vst.msk [vmem:[#allocation2 + $0x18] sm:$0xf] %vm425, %v414
      %433 = vst.msk [vmem:[#allocation2 + $0x1c] sm:$0xf] %vm425, %v416
      %v434 = vld [vmem:[#allocation2] sm:$0xf]
      %v435 = vld [vmem:[#allocation2 + $0x4] sm:$0xf]
      %v436 = vld [vmem:[#allocation2 + $0x8] sm:$0xf]
      %v437 = vld [vmem:[#allocation2 + $0xc] sm:$0xf]
      %v438 = vld [vmem:[#allocation2 + $0x10] sm:$0xf]
      %v439 = vld [vmem:[#allocation2 + $0x14] sm:$0xf]
      %v440 = vld [vmem:[#allocation2 + $0x18] sm:$0xf]
      %v441 = vld [vmem:[#allocation2 + $0x1c] sm:$0xf]
      %v442 = vld [vmem:[%s2] sm:$0xf]
      %v443 = vld [vmem:[%s2 + $0x4] sm:$0xf]
      %v444 = vld [vmem:[%s2 + $0x8] sm:$0xf]
      %v445 = vld [vmem:[%s2 + $0xc] sm:$0xf]
      %s446 = scalar_lea.vmem %s2, 16
      %v447 = vld [vmem:[%s446] sm:$0xf]
      %v448 = vld [vmem:[%s446 + $0x4] sm:$0xf]
      %v449 = vld [vmem:[%s446 + $0x8] sm:$0xf]
      %v450 = vld [vmem:[%s446 + $0xc] sm:$0xf]
      %v455 = vunpack.c.l.b16 %v447
      %v456 = vunpack.c.l.b16 %v448
      %v457 = vunpack.c.l.b16 %v449
      %v458 = vunpack.c.l.b16 %v450
      %v459 = vpack.c.b16 %v456, %v455
      %v460 = vpack.c.b16 %v458, %v457
      %v469 = vunpack.c.l.b16 %v434
      %v470 = vunpack.c.l.b16 %v435
      %v471 = vunpack.c.l.b16 %v436
      %v472 = vunpack.c.l.b16 %v437
      %v473 = vunpack.c.l.b16 %v438
      %v474 = vunpack.c.l.b16 %v439
      %v475 = vunpack.c.l.b16 %v440
      %v476 = vunpack.c.l.b16 %v441
      %v477 = vpack.c.b16 %v470, %v469
      %v478 = vpack.c.b16 %v472, %v471
      %v479 = vpack.c.b16 %v474, %v473
      %v480 = vpack.c.b16 %v476, %v475
      %481 = vrot.lane.b32.xlu0 %v477, 127
      %v482 = vpop.permute.xlu0 %481
      %483 = vrot.lane.b32.xlu0 %v478, 127
      %v484 = vpop.permute.xlu0 %483
      %485 = vrot.lane.b32.xlu0 %v479, 127
      %v486 = vpop.permute.xlu0 %485
      %487 = vrot.lane.b32.xlu0 %v480, 127
      %v488 = vpop.permute.xlu0 %487
      %vm493 = vcmask 523264
      %v495 = vsel %vm493, %v459, 0
      %v498 = vsel %vm493, %v460, 0
      %500 = vmatpush.bf16.msra.mxu0 0
      %501 = vmatpush.bf16.msra.mxu0 0
      %502 = vmatpush.bf16.msra.mxu0 0
      %503 = vmatpush.bf16.msra.mxu0 0
      %504 = vmatpush.bf16.msra.mxu0 %v488
      %505 = vmatpush.bf16.msra.mxu0 %v486
      %506 = vmatpush.bf16.msra.mxu0 %v484
      %507 = vmatpush.bf16.msra.mxu0 %v482
      %508 = vmatmul.bf16.gmra.mxu0 %v495
      %v509 = vpop.f32.mrf.mxu0
      %v510 = vadd.f32 0.0, %v509
      %v511 = vpop.f32.mrf.mxu0
      %v512 = vadd.f32 0.0, %v511
      %513 = vmatmul.bf16.gmra.mxu0 %v498
      %v514 = vpop.f32.mrf.mxu0
      %v515 = vadd.f32 0.0, %v514
      %v516 = vpop.f32.mrf.mxu0
      %v517 = vadd.f32 0.0, %v516
      %518 = vdwg.mxu0
      %v523 = vunpack.c.l.b16 %v442
      %v524 = vunpack.c.l.b16 %v443
      %v525 = vunpack.c.l.b16 %v444
      %v526 = vunpack.c.l.b16 %v445
      %v527 = vpack.c.b16 %v524, %v523
      %v528 = vpack.c.b16 %v526, %v525
      %529 = vrot.lane.b32.xlu0 %v477, 126
      %v530 = vpop.permute.xlu0 %529
      %531 = vrot.lane.b32.xlu0 %v478, 126
      %v532 = vpop.permute.xlu0 %531
      %533 = vrot.lane.b32.xlu0 %v479, 126
      %v534 = vpop.permute.xlu0 %533
      %535 = vrot.lane.b32.xlu0 %v480, 126
      %v536 = vpop.permute.xlu0 %535
      %v542 = vsel %vm493, %v527, 0
      %v545 = vsel %vm493, %v528, 0
      %547 = vmatpush.bf16.msra.mxu0 0
      %548 = vmatpush.bf16.msra.mxu0 0
      %549 = vmatpush.bf16.msra.mxu0 0
      %550 = vmatpush.bf16.msra.mxu0 0
      %551 = vmatpush.bf16.msra.mxu0 %v536
      %552 = vmatpush.bf16.msra.mxu0 %v534
      %553 = vmatpush.bf16.msra.mxu0 %v532
      %554 = vmatpush.bf16.msra.mxu0 %v530
      %555 = vmatmul.bf16.gmra.mxu0 %v542
      %v556 = vpop.f32.mrf.mxu0
      %v557 = vadd.f32 %v510, %v556
      %v558 = vpop.f32.mrf.mxu0
      %v559 = vadd.f32 %v512, %v558
      %560 = vmatmul.bf16.gmra.mxu0 %v545
      %v561 = vpop.f32.mrf.mxu0
      %v562 = vadd.f32 %v515, %v561
      %v563 = vpop.f32.mrf.mxu0
      %v564 = vadd.f32 %v517, %v563
      %565 = vdwg.mxu0
      %s566 = scalar_lea.vmem %s2, 32
      %v567 = vld [vmem:[%s566] sm:$0xf]
      %v568 = vld [vmem:[%s566 + $0x4] sm:$0xf]
      %v569 = vld [vmem:[%s566 + $0x8] sm:$0xf]
      %v570 = vld [vmem:[%s566 + $0xc] sm:$0xf]
      %v575 = vunpack.c.l.b16 %v567
      %v576 = vunpack.c.l.b16 %v568
      %v577 = vunpack.c.l.b16 %v569
      %v578 = vunpack.c.l.b16 %v570
      %v579 = vpack.c.b16 %v576, %v575
      %v580 = vpack.c.b16 %v578, %v577
      %v586 = vsel %vm493, %v579, 0
      %v589 = vsel %vm493, %v580, 0
      %591 = vmatpush.bf16.msra.mxu0 0
      %592 = vmatpush.bf16.msra.mxu0 0
      %593 = vmatpush.bf16.msra.mxu0 0
      %594 = vmatpush.bf16.msra.mxu0 0
      %595 = vmatpush.bf16.msra.mxu0 %v480
      %596 = vmatpush.bf16.msra.mxu0 %v479
      %597 = vmatpush.bf16.msra.mxu0 %v478
      %598 = vmatpush.bf16.msra.mxu0 %v477
      %599 = vmatmul.bf16.gmra.mxu0 %v586
      %v600 = vpop.f32.mrf.mxu0
      %v601 = vadd.f32 0.0, %v600
      %v602 = vpop.f32.mrf.mxu0
      %v603 = vadd.f32 0.0, %v602
      %604 = vmatmul.bf16.gmra.mxu0 %v589
      %v605 = vpop.f32.mrf.mxu0
      %v606 = vadd.f32 0.0, %v605
      %v607 = vpop.f32.mrf.mxu0
      %v608 = vadd.f32 0.0, %v607
      %609 = vdwg.mxu0
      %v610 = vadd.f32 %v557, %v601
      %v611 = vadd.f32 %v559, %v603
      %v612 = vadd.f32 %v562, %v606
      %v613 = vadd.f32 %v564, %v608
      %v614 = vld [vmem:[%s3] sm:$0xff]
      %v615 = vld [vmem:[%s3 + $0x8] sm:$0xff]
      %v616 = vld [vmem:[%s3 + $0x10] sm:$0xff]
      %v617 = vld [vmem:[%s3 + $0x18] sm:$0xff]
      %619 = vset.pattern.permute.xlu0 0
      %620 = vperm.xlu0 %619, %v614
      %v621 = vpop.permute.xlu0 %620
      %624 = vset.pattern.permute.xlu0 0
      %625 = vperm.xlu0 %624, %v615
      %v626 = vpop.permute.xlu0 %625
      %629 = vset.pattern.permute.xlu0 0
      %630 = vperm.xlu0 %629, %v616
      %v631 = vpop.permute.xlu0 %630
      %634 = vset.pattern.permute.xlu0 0
      %635 = vperm.xlu0 %634, %v617
      %v636 = vpop.permute.xlu0 %635
      %v638 = vadd.f32 %v610, %v621
      %v639 = vadd.f32 %v611, %v626
      %v640 = vadd.f32 %v612, %v631
      %v641 = vadd.f32 %v613, %v636
      %v642 = vmax.f32 %v638, 0.0
      %v643 = vmax.f32 %v639, 0.0
      %v644 = vmax.f32 %v640, 0.0
      %v645 = vmax.f32 %v641, 0.0
      %v646 = vld [vmem:[%s4] sm:$0x7]
      %vm647 = vcmask 261120
      %v649 = vsel %vm647, %v646, 0
      %651 = vmatpush.msra.mxu0 0.0
      %652 = vmatpush.msra.mxu0 0.0
      %653 = vmatpush.msra.mxu0 0.0
      %654 = vmatpush.msra.mxu0 0.0
      %655 = vmatpush.msra.mxu0 0.0
      %656 = vmatpush.msra.mxu0 0.0
      %657 = vmatpush.msra.mxu0 0.0
      %658 = vmatpush.msra.mxu0 0.0
      %659 = vmatpush.msra.mxu0 0.0
      %660 = vmatpush.msra.mxu0 0.0
      %661 = vmatpush.msra.mxu0 0.0
      %662 = vmatpush.msra.mxu0 0.0
      %663 = vmatpush.msra.mxu0 %v645
      %664 = vmatpush.msra.mxu0 %v644
      %665 = vmatpush.msra.mxu0 %v643
      %666 = vmatpush.msra.mxu0 %v642
      %667 = vmatmul.f32.gmra.mxu0 %v649
      %v668 = vpop.f32.mrf.mxu0
      %v669 = vadd.f32 0.0, %v668
      %670 = vdwg.mxu0
      %v671 = vlaneseq
      %v672 = vand.u32 %v671, 127
      %s673 = ssub.s32 %s318, 1
      %v674 = vstv %s673
      %v675 = vadd.s32 %v672, %v674
      %vm676 = vcmp.ge.s32.totalorder %v675, 0
      %vm677 = vcmp.lt.s32.totalorder %v675, 40
      %vm678 = vmand %vm676, %vm677
      %v679 = vsel %vm678, 1, 0
      %vm680 = vcmp.eq.s32.totalorder %v679, 1
      %v681 = vsel %vm680, %v669, 0.0
      %v682 = vld [vmem:[#allocation3] sm:$0x1]
      %v684 = vrot.slane %v681, 1
      %v686 = vadd.f32 %v681, %v684
      %v687 = vrot.slane %v681, 2
      %688 = vrot.lane.b32.xlu0 %v687, 1
      %v689 = vpop.permute.xlu0 %688
      %v691 = vadd.f32 %v686, %v689
      %693 = vset.pattern.permute.xlu0 0
      %694 = vperm.xlu0 %693, %v682
      %v695 = vpop.permute.xlu0 %694
      %v697 = vperm.slane %v695, 0
      %v698 = vadd.f32 %v691, %v697
      %699 = vrot.lane.b32.xlu0 %v684, 1
      %v700 = vpop.permute.xlu0 %699
      %v702 = vadd.f32 %v681, %v700
      %v703 = vadd.f32 %v702, %v689
      %v704 = vadd.f32 %v703, %v697
      %v706 = vrot.slane %v704, 7
      %707 = vrot.lane.b32.xlu0 %v706, 127
      %v708 = vpop.permute.xlu0 %707
      %vm710 = vcmask 1040384
      %v711 = vsel %vm710, %v698, %v708
      %v712 = vxor.u32 %v711, 2147483648
      %v713 = vmul.f32 %v712, 1.442695
      %v714 = vpow.pop %v713
      %v715 = vadd.f32 %v714, 1.0
      %v716 = vrcp.pop %v715
      %v717 = vmul.f32 %v715, %v716
      %v718 = vsub.f32 1.0, %v717
      %v719 = vmul.f32 %v716, %v718
      %v720 = vadd.f32 %v716, %v719
      %vm721 = vweird.f32 %v715
      %vm722 = vweird.f32 %v716
      %vm723 = vmor %vm721, %vm722
      %v724 = vsel %vm723, %v716, %v720
      %v725 = vand.u32 2147483647, %v715
      %vm726 = vcmp.eq.f32.partialorder %v725, 8.507059e+37
      %v727 = vand.u32 %v715, 2147483648
      %v728 = vor.u32 1.1754944e-38, %v727
      %v729 = vsel %vm726, %v728, %v724
      %v730 = vmul.f32 1.0, %v729
      %732 = vrot.lane.b32.xlu0 %v730, 127
      %v733 = vpop.permute.xlu0 %732
      %vm735 = vcmask 320512
      %736 = vst.msk [vmem:[%s316] sm:$0x3] %vm735, %v733
      %p737 = scmp.lt.s32.totalorder %s23, 1
      %s738 = scalar_select %p737, %s23, 1
      %p739 = scmp.lt.s32.totalorder %s24, 0
      %s740 = scalar_select %p739, %s24, 0
      %s741 = sadd.s32 %s740, %s738
      %s742 = smul.addr %s741, 2
      %s743 = scalar_lea.vmem %s6, %s742
      // Predicated region
      $region45: #{_lambda_.3} parent=43 // pred_check
        %p744 = pneg %p191
      $region46: #{_lambda_.3} parent=43 // pred_check_branch
        %746 = sbr.rel (%p744) target = $region48
      $region47: #{_lambda_.3} parent=43 // pred_region
        _
      $region48: #{_lambda_.3} parent=43 // pred_fallthru
        _
    $region44: #{_lambda_.3} parent=5 // pred_fallthru
      _
    %p747 = scmp.le.s32.totalorder 2, %s14
    // Predicated region
    $region49: #{_lambda_.3} parent=5 // pred_check
      %p748 = pneg %p747
    $region50: #{_lambda_.3} parent=5 // pred_check_branch
      %750 = sbr.rel (%p748) target = $region52
    $region51: #{_lambda_.3} parent=5 // pred_region
      %s751 = ssub.s32 %s14, 2
      // Predicated region
      $region53: #{_lambda_.3} parent=51 // pred_check
        %p752 = pneg %p197
      $region54: #{_lambda_.3} parent=51 // pred_check_branch
        %754 = sbr.rel (%p752) target = $region56
      $region55: #{_lambda_.3} parent=51 // pred_region
        %p755 = scmp.lt.s32.totalorder %s25, 1
        %s756 = scalar_select %p755, %s25, 1
        %p757 = scmp.lt.s32.totalorder %s26, 0
        %s758 = scalar_select %p757, %s26, 0
        %s759 = sadd.s32 %s758, %s756
        %s760 = smul.addr %s759, 2
        %s761 = scalar_lea.vmem %s6, %s760
      $region56: #{_lambda_.3} parent=51 // pred_fallthru
        _
    $region52: #{_lambda_.3} parent=5 // pred_fallthru
      _
  $region6: #{_lambda_.3} parent=0 // loop_footer
    %s18 = sadd.s32 1, %s14
  $region7: #{_lambda_.3} parent=0 // loop_footer_branch
    %13 = sbr.rel target = $region3
  $region8: #{_lambda_.3} parent=0 // loop_exit
    _

// kernel: _lambda_.2
$region0: #{_lambda_.2}
  #allocation0 [shape = 'u32[]', space=smem, size = 0x4, offset = 0x4, fixed_abs, tag = 'smem constant byte address 0x4 - core index']
  #allocation1 [shape = 'u32[72,128]{1,0:T(1,128)}', space=vmem, size = 0x9000, scoped, tag = 'internal scratch']
  %s0 = inlined_call_operand.vmem [shape: bf16[2,32], index: 0, kind: input, shape index: {}]
  %s1 = inlined_call_operand.hbm [shape: bf16[32,2560], index: 1, kind: input, shape index: {}]
  %s2 = inlined_call_operand.hbm [shape: f32[1,2560], index: 2, kind: input, shape index: {}]
  %s3 = inlined_call_operand.vmem [shape: bf16[2,2560], index: 3, kind: output, shape index: {}]
  %s4 = sld [smem:[#allocation0]]
  $region30: #{_lambda_.2} parent=0
    _
  %s6 = ssub.s32 1, %s4
  %s7 = scalar_select 0, %s6, %s4
  $region1: #{_lambda_.2} parent=0
    #allocation2 [shape = 'u8[163840]{0}', space=vmem, size = 0x28000, scoped, tag = 'input window, operand 1, single buffered']
    #allocation3 [shape = 's32[1]{0}', space=sflag, size = 0x4, scoped, tag = 'scoped memory for _lambda_.2']
    #allocation4 [shape = 'u8[10240]{0}', space=vmem, size = 0x2800, scoped, tag = 'input window, operand 2, single buffered']
    #allocation5 [shape = 's32[1]{0}', space=sflag, size = 0x4, scoped, tag = 'scoped memory for _lambda_.2']
    %8 = vsyncpa [#allocation3], 0
    %9 = vsyncpa [#allocation5], 0
    // Predicated region
    $region2: #{_lambda_.2} parent=1 // pred_check
      _
    $region3: #{_lambda_.2} parent=1 // pred_check_branch
      %11 = sbr.rel (0) target = $region5
    $region4: #{_lambda_.2} parent=1 // pred_region
      _
    $region5: #{_lambda_.2} parent=1 // pred_fallthru
      _
    // Predicated region
    $region6: #{_lambda_.2} parent=1 // pred_check
      _
    $region7: #{_lambda_.2} parent=1 // pred_check_branch
      %13 = sbr.rel (0) target = $region9
    $region8: #{_lambda_.2} parent=1 // pred_region
      %15 = vsyncadd [#allocation3], 0
      %s16 = sshll.u32 %s1, 4
      %s17 = int_to_ptr.hbm [resolvable:$true] %s16
      %s18 = sshll.u32 [#allocation2], 4
      %s19 = int_to_ptr.vmem [resolvable:$true] %s18
      %24 = dma.hbm_to_vmem [thread:$0]  %s17, 5120, %s19, [#allocation3], 1280, 1280, 80
    $region9: #{_lambda_.2} parent=1 // pred_fallthru
      _
    // Predicated region
    $region10: #{_lambda_.2} parent=1 // pred_check
      _
    $region11: #{_lambda_.2} parent=1 // pred_check_branch
      %26 = sbr.rel (0) target = $region13
    $region12: #{_lambda_.2} parent=1 // pred_region
      %28 = vsyncadd [#allocation5], 0
      %s30 = sshll.u32 %s2, 4
      %s31 = int_to_ptr.hbm [resolvable:$true] %s30
      %s32 = sshll.u32 [#allocation4], 4
      %s33 = int_to_ptr.vmem [resolvable:$true] %s32
      %35 = dma.hbm_to_vmem [thread:$0]  %s31, 320, %s33, [#allocation5]
    $region13: #{_lambda_.2} parent=1 // pred_fallthru
      _
    // Predicated region
    $region14: #{_lambda_.2} parent=1 // pred_check
      _
    $region15: #{_lambda_.2} parent=1 // pred_check_branch
      %37 = sbr.rel (0) target = $region17
    $region16: #{_lambda_.2} parent=1 // pred_region
      %39 = dma.done [#allocation3], 5120
    $region17: #{_lambda_.2} parent=1 // pred_fallthru
      _
    // Predicated region
    $region18: #{_lambda_.2} parent=1 // pred_check
      _
    $region19: #{_lambda_.2} parent=1 // pred_check_branch
      %41 = sbr.rel (0) target = $region21
    $region20: #{_lambda_.2} parent=1 // pred_region
      %43 = dma.done [#allocation5], 320
    $region21: #{_lambda_.2} parent=1 // pred_fallthru
      _
    %v45 = vld [vmem:[%s0] sm:$0x1]
    %v46 = vld [vmem:[#allocation2] sm:$0xff]
    %v47 = vld [vmem:[#allocation2 + $0x8] sm:$0xff]
    %v48 = vld [vmem:[#allocation2 + $0x10] sm:$0xff]
    %v49 = vld [vmem:[#allocation2 + $0x18] sm:$0xff]
    %v50 = vld [vmem:[#allocation2 + $0x20] sm:$0xff]
    %v51 = vld [vmem:[#allocation2 + $0x28] sm:$0xff]
    %v52 = vld [vmem:[#allocation2 + $0x30] sm:$0xff]
    %v53 = vld [vmem:[#allocation2 + $0x38] sm:$0xff]
    %v54 = vld [vmem:[#allocation2 + $0x40] sm:$0xff]
    %v55 = vld [vmem:[#allocation2 + $0x48] sm:$0xff]
    %v56 = vld [vmem:[#allocation2 + $0x50] sm:$0xff]
    %v57 = vld [vmem:[#allocation2 + $0x58] sm:$0xff]
    %v58 = vld [vmem:[#allocation2 + $0x60] sm:$0xff]
    %v59 = vld [vmem:[#allocation2 + $0x68] sm:$0xff]
    %v60 = vld [vmem:[#allocation2 + $0x70] sm:$0xff]
    %v61 = vld [vmem:[#allocation2 + $0x78] sm:$0xff]
    %v62 = vld [vmem:[#allocation2 + $0x80] sm:$0xff]
    %v63 = vld [vmem:[#allocation2 + $0x88] sm:$0xff]
    %v64 = vld [vmem:[#allocation2 + $0x90] sm:$0xff]
    %v65 = vld [vmem:[#allocation2 + $0x98] sm:$0xff]
    %v66 = vld [vmem:[#allocation2 + $0xa0] sm:$0xff]
    %v67 = vld [vmem:[#allocation2 + $0xa8] sm:$0xff]
    %v68 = vld [vmem:[#allocation2 + $0xb0] sm:$0xff]
    %v69 = vld [vmem:[#allocation2 + $0xb8] sm:$0xff]
    %v70 = vld [vmem:[#allocation2 + $0xc0] sm:$0xff]
    %v71 = vld [vmem:[#allocation2 + $0xc8] sm:$0xff]
    %v72 = vld [vmem:[#allocation2 + $0xd0] sm:$0xff]
    %v73 = vld [vmem:[#allocation2 + $0xd8] sm:$0xff]
    %v74 = vld [vmem:[#allocation2 + $0xe0] sm:$0xff]
    %v75 = vld [vmem:[#allocation2 + $0xe8] sm:$0xff]
    %v76 = vld [vmem:[#allocation2 + $0xf0] sm:$0xff]
    %v77 = vld [vmem:[#allocation2 + $0xf8] sm:$0xff]
    %v78 = vld [vmem:[#allocation2 + $0x100] sm:$0xff]
    %v79 = vld [vmem:[#allocation2 + $0x108] sm:$0xff]
    %v80 = vld [vmem:[#allocation2 + $0x110] sm:$0xff]
    %v81 = vld [vmem:[#allocation2 + $0x118] sm:$0xff]
    %v82 = vld [vmem:[#allocation2 + $0x120] sm:$0xff]
    %v83 = vld [vmem:[#allocation2 + $0x128] sm:$0xff]
    %v84 = vld [vmem:[#allocation2 + $0x130] sm:$0xff]
    %v85 = vld [vmem:[#allocation2 + $0x138] sm:$0xff]
    %v86 = vld [vmem:[#allocation4] sm:$0xff]
    %v87 = vld [vmem:[#allocation4 + $0x8] sm:$0xff]
    %v88 = vld [vmem:[#allocation4 + $0x10] sm:$0xf]
    %v92 = vperm.slane %v86, 0
    %v93 = vperm.slane %v86, 1
    %v94 = vperm.slane %v86, 2
    %v95 = vperm.slane %v86, 3
    %v96 = vperm.slane %v86, 4
    %v97 = vperm.slane %v86, 5
    %v98 = vperm.slane %v86, 6
    %v99 = vperm.slane %v86, 7
    %v100 = vperm.slane %v87, 0
    %v101 = vperm.slane %v87, 1
    %v102 = vperm.slane %v87, 2
    %v103 = vperm.slane %v87, 3
    %v104 = vperm.slane %v87, 4
    %v105 = vperm.slane %v87, 5
    %v106 = vperm.slane %v87, 6
    %v107 = vperm.slane %v87, 7
    %v108 = vperm.slane %v88, 0
    %v109 = vperm.slane %v88, 1
    %v110 = vperm.slane %v88, 2
    %v111 = vperm.slane %v88, 3
    %v172 = vunpack.c.l.b16 %v46
    %v173 = vunpack.c.h.b16 %v46
    %v174 = vunpack.c.l.b16 %v47
    %v175 = vunpack.c.h.b16 %v47
    %v176 = vunpack.c.l.b16 %v48
    %v177 = vunpack.c.h.b16 %v48
    %v178 = vunpack.c.l.b16 %v49
    %v179 = vunpack.c.h.b16 %v49
    %v180 = vunpack.c.l.b16 %v50
    %v181 = vunpack.c.h.b16 %v50
    %v182 = vunpack.c.l.b16 %v51
    %v183 = vunpack.c.h.b16 %v51
    %v184 = vunpack.c.l.b16 %v52
    %v185 = vunpack.c.h.b16 %v52
    %v186 = vunpack.c.l.b16 %v53
    %v187 = vunpack.c.h.b16 %v53
    %v188 = vunpack.c.l.b16 %v54
    %v189 = vunpack.c.h.b16 %v54
    %v190 = vunpack.c.l.b16 %v55
    %v191 = vunpack.c.h.b16 %v55
    %v192 = vunpack.c.l.b16 %v56
    %v193 = vunpack.c.h.b16 %v56
    %v194 = vunpack.c.l.b16 %v57
    %v195 = vunpack.c.h.b16 %v57
    %v196 = vunpack.c.l.b16 %v58
    %v197 = vunpack.c.h.b16 %v58
    %v198 = vunpack.c.l.b16 %v59
    %v199 = vunpack.c.h.b16 %v59
    %v200 = vunpack.c.l.b16 %v60
    %v201 = vunpack.c.h.b16 %v60
    %v202 = vunpack.c.l.b16 %v61
    %v203 = vunpack.c.h.b16 %v61
    %v204 = vunpack.c.l.b16 %v62
    %v205 = vunpack.c.h.b16 %v62
    %v206 = vunpack.c.l.b16 %v63
    %v207 = vunpack.c.h.b16 %v63
    %v208 = vunpack.c.l.b16 %v64
    %v209 = vunpack.c.h.b16 %v64
    %v210 = vunpack.c.l.b16 %v65
    %v211 = vunpack.c.h.b16 %v65
    %v212 = vunpack.c.l.b16 %v66
    %v213 = vunpack.c.h.b16 %v66
    %v214 = vunpack.c.l.b16 %v67
    %v215 = vunpack.c.h.b16 %v67
    %v216 = vunpack.c.l.b16 %v68
    %v217 = vunpack.c.h.b16 %v68
    %v218 = vunpack.c.l.b16 %v69
    %v219 = vunpack.c.h.b16 %v69
    %v220 = vunpack.c.l.b16 %v70
    %v221 = vunpack.c.h.b16 %v70
    %v222 = vunpack.c.l.b16 %v71
    %v223 = vunpack.c.h.b16 %v71
    %v224 = vunpack.c.l.b16 %v72
    %v225 = vunpack.c.h.b16 %v72
    %v226 = vunpack.c.l.b16 %v73
    %v227 = vunpack.c.h.b16 %v73
    %v228 = vunpack.c.l.b16 %v74
    %v229 = vunpack.c.h.b16 %v74
    %v230 = vunpack.c.l.b16 %v75
    %v231 = vunpack.c.h.b16 %v75
    %v232 = vunpack.c.l.b16 %v76
    %v233 = vunpack.c.h.b16 %v76
    %v234 = vunpack.c.l.b16 %v77
    %v235 = vunpack.c.h.b16 %v77
    %v236 = vunpack.c.l.b16 %v78
    %v237 = vunpack.c.h.b16 %v78
    %v238 = vunpack.c.l.b16 %v79
    %v239 = vunpack.c.h.b16 %v79
    %v240 = vunpack.c.l.b16 %v80
    %v241 = vunpack.c.h.b16 %v80
    %v242 = vunpack.c.l.b16 %v81
    %v243 = vunpack.c.h.b16 %v81
    %v244 = vunpack.c.l.b16 %v82
    %v245 = vunpack.c.h.b16 %v82
    %v246 = vunpack.c.l.b16 %v83
    %v247 = vunpack.c.h.b16 %v83
    %v248 = vunpack.c.l.b16 %v84
    %v249 = vunpack.c.h.b16 %v84
    %v250 = vunpack.c.l.b16 %v85
    %v251 = vunpack.c.h.b16 %v85
    %v252 = vpack.c.b16 %v192, %v172
    %v253 = vpack.c.b16 %v193, %v173
    %v254 = vpack.c.b16 %v194, %v174
    %v255 = vpack.c.b16 %v195, %v175
    %v256 = vpack.c.b16 %v196, %v176
    %v257 = vpack.c.b16 %v197, %v177
    %v258 = vpack.c.b16 %v198, %v178
    %v259 = vpack.c.b16 %v199, %v179
    %v260 = vpack.c.b16 %v200, %v180
    %v261 = vpack.c.b16 %v201, %v181
    %v262 = vpack.c.b16 %v202, %v182
    %v263 = vpack.c.b16 %v203, %v183
    %v264 = vpack.c.b16 %v204, %v184
    %v265 = vpack.c.b16 %v205, %v185
    %v266 = vpack.c.b16 %v206, %v186
    %v267 = vpack.c.b16 %v207, %v187
    %v268 = vpack.c.b16 %v208, %v188
    %v269 = vpack.c.b16 %v209, %v189
    %v270 = vpack.c.b16 %v210, %v190
    %v271 = vpack.c.b16 %v211, %v191
    %v272 = vpack.c.b16 %v232, %v212
    %v273 = vpack.c.b16 %v233, %v213
    %v274 = vpack.c.b16 %v234, %v214
    %v275 = vpack.c.b16 %v235, %v215
    %v276 = vpack.c.b16 %v236, %v216
    %v277 = vpack.c.b16 %v237, %v217
    %v278 = vpack.c.b16 %v238, %v218
    %v279 = vpack.c.b16 %v239, %v219
    %v280 = vpack.c.b16 %v240, %v220
    %v281 = vpack.c.b16 %v241, %v221
    %v282 = vpack.c.b16 %v242, %v222
    %v283 = vpack.c.b16 %v243, %v223
    %v284 = vpack.c.b16 %v244, %v224
    %v285 = vpack.c.b16 %v245, %v225
    %v286 = vpack.c.b16 %v246, %v226
    %v287 = vpack.c.b16 %v247, %v227
    %v288 = vpack.c.b16 %v248, %v228
    %v289 = vpack.c.b16 %v249, %v229
    %v290 = vpack.c.b16 %v250, %v230
    %v291 = vpack.c.b16 %v251, %v231
    %vm332 = vcmask 261120
    %v334 = vsel %vm332, %v45, 0
    %336 = vmatpush.bf16.msra.mxu0 0
    %337 = vmatpush.bf16.msra.mxu0 0
    %338 = vmatpush.bf16.msra.mxu0 0
    %339 = vmatpush.bf16.msra.mxu0 0
    %340 = vmatpush.bf16.msra.mxu0 0
    %341 = vmatpush.bf16.msra.mxu0 0
    %342 = vmatpush.bf16.msra.mxu0 %v272
    %343 = vmatpush.bf16.msra.mxu0 %v252
    %344 = vmatmul.bf16.gmra.mxu0 %v334
    %v345 = vpop.f32.mrf.mxu0
    %v346 = vadd.f32 %v92, %v345
    %v347 = vpop.f32.mrf.mxu0
    %348 = vdwg.mxu0
    %349 = vmatpush.bf16.msra.mxu0 0
    %350 = vmatpush.bf16.msra.mxu0 0
    %351 = vmatpush.bf16.msra.mxu0 0
    %352 = vmatpush.bf16.msra.mxu0 0
    %353 = vmatpush.bf16.msra.mxu0 0
    %354 = vmatpush.bf16.msra.mxu0 0
    %355 = vmatpush.bf16.msra.mxu0 %v273
    %356 = vmatpush.bf16.msra.mxu0 %v253
    %357 = vmatmul.bf16.gmra.mxu0 %v334
    %v358 = vpop.f32.mrf.mxu0
    %v359 = vadd.f32 %v93, %v358
    %v360 = vpop.f32.mrf.mxu0
    %361 = vdwg.mxu0
    %362 = vmatpush.bf16.msra.mxu0 0
    %363 = vmatpush.bf16.msra.mxu0 0
    %364 = vmatpush.bf16.msra.mxu0 0
    %365 = vmatpush.bf16.msra.mxu0 0
    %366 = vmatpush.bf16.msra.mxu0 0
    %367 = vmatpush.bf16.msra.mxu0 0
    %368 = vmatpush.bf16.msra.mxu0 %v274
    %369 = vmatpush.bf16.msra.mxu0 %v254
    %370 = vmatmul.bf16.gmra.mxu0 %v334
    %v371 = vpop.f32.mrf.mxu0
    %v372 = vadd.f32 %v94, %v371
    %v373 = vpop.f32.mrf.mxu0
    %374 = vdwg.mxu0
    %375 = vmatpush.bf16.msra.mxu0 0
    %376 = vmatpush.bf16.msra.mxu0 0
    %377 = vmatpush.bf16.msra.mxu0 0
    %378 = vmatpush.bf16.msra.mxu0 0
    %379 = vmatpush.bf16.msra.mxu0 0
    %380 = vmatpush.bf16.msra.mxu0 0
    %381 = vmatpush.bf16.msra.mxu0 %v275
    %382 = vmatpush.bf16.msra.mxu0 %v255
    %383 = vmatmul.bf16.gmra.mxu0 %v334
    %v384 = vpop.f32.mrf.mxu0
    %v385 = vadd.f32 %v95, %v384
    %v386 = vpop.f32.mrf.mxu0
    %387 = vdwg.mxu0
    %388 = vmatpush.bf16.msra.mxu0 0
    %389 = vmatpush.bf16.msra.mxu0 0
    %390 = vmatpush.bf16.msra.mxu0 0
    %391 = vmatpush.bf16.msra.mxu0 0
    %392 = vmatpush.bf16.msra.mxu0 0
    %393 = vmatpush.bf16.msra.mxu0 0
    %394 = vmatpush.bf16.msra.mxu0 %v276
    %395 = vmatpush.bf16.msra.mxu0 %v256
    %396 = vmatmul.bf16.gmra.mxu0 %v334
    %v397 = vpop.f32.mrf.mxu0
    %v398 = vadd.f32 %v96, %v397
    %v399 = vpop.f32.mrf.mxu0
    %400 = vdwg.mxu0
    %401 = vmatpush.bf16.msra.mxu0 0
    %402 = vmatpush.bf16.msra.mxu0 0
    %403 = vmatpush.bf16.msra.mxu0 0
    %404 = vmatpush.bf16.msra.mxu0 0
    %405 = vmatpush.bf16.msra.mxu0 0
    %406 = vmatpush.bf16.msra.mxu0 0
    %407 = vmatpush.bf16.msra.mxu0 %v277
    %408 = vmatpush.bf16.msra.mxu0 %v257
    %409 = vmatmul.bf16.gmra.mxu0 %v334
    %v410 = vpop.f32.mrf.mxu0
    %v411 = vadd.f32 %v97, %v410
    %v412 = vpop.f32.mrf.mxu0
    %413 = vdwg.mxu0
    %414 = vmatpush.bf16.msra.mxu0 0
    %415 = vmatpush.bf16.msra.mxu0 0
    %416 = vmatpush.bf16.msra.mxu0 0
    %417 = vmatpush.bf16.msra.mxu0 0
    %418 = vmatpush.bf16.msra.mxu0 0
    %419 = vmatpush.bf16.msra.mxu0 0
    %420 = vmatpush.bf16.msra.mxu0 %v278
    %421 = vmatpush.bf16.msra.mxu0 %v258
    %422 = vmatmul.bf16.gmra.mxu0 %v334
    %v423 = vpop.f32.mrf.mxu0
    %v424 = vadd.f32 %v98, %v423
    %v425 = vpop.f32.mrf.mxu0
    %426 = vdwg.mxu0
    %427 = vmatpush.bf16.msra.mxu0 0
    %428 = vmatpush.bf16.msra.mxu0 0
    %429 = vmatpush.bf16.msra.mxu0 0
    %430 = vmatpush.bf16.msra.mxu0 0
    %431 = vmatpush.bf16.msra.mxu0 0
    %432 = vmatpush.bf16.msra.mxu0 0
    %433 = vmatpush.bf16.msra.mxu0 %v279
    %434 = vmatpush.bf16.msra.mxu0 %v259
    %435 = vmatmul.bf16.gmra.mxu0 %v334
    %v436 = vpop.f32.mrf.mxu0
    %v437 = vadd.f32 %v99, %v436
    %v438 = vpop.f32.mrf.mxu0
    %439 = vdwg.mxu0
    %440 = vmatpush.bf16.msra.mxu0 0
    %441 = vmatpush.bf16.msra.mxu0 0
    %442 = vmatpush.bf16.msra.mxu0 0
    %443 = vmatpush.bf16.msra.mxu0 0
    %444 = vmatpush.bf16.msra.mxu0 0
    %445 = vmatpush.bf16.msra.mxu0 0
    %446 = vmatpush.bf16.msra.mxu0 %v280
    %447 = vmatpush.bf16.msra.mxu0 %v260
    %448 = vmatmul.bf16.gmra.mxu0 %v334
    %v449 = vpop.f32.mrf.mxu0
    %v450 = vadd.f32 %v100, %v449
    %v451 = vpop.f32.mrf.mxu0
    %452 = vdwg.mxu0
    %453 = vmatpush.bf16.msra.mxu0 0
    %454 = vmatpush.bf16.msra.mxu0 0
    %455 = vmatpush.bf16.msra.mxu0 0
    %456 = vmatpush.bf16.msra.mxu0 0
    %457 = vmatpush.bf16.msra.mxu0 0
    %458 = vmatpush.bf16.msra.mxu0 0
    %459 = vmatpush.bf16.msra.mxu0 %v281
    %460 = vmatpush.bf16.msra.mxu0 %v261
    %461 = vmatmul.bf16.gmra.mxu0 %v334
    %v462 = vpop.f32.mrf.mxu0
    %v463 = vadd.f32 %v101, %v462
    %v464 = vpop.f32.mrf.mxu0
    %465 = vdwg.mxu0
    %466 = vmatpush.bf16.msra.mxu0 0
    %467 = vmatpush.bf16.msra.mxu0 0
    %468 = vmatpush.bf16.msra.mxu0 0
    %469 = vmatpush.bf16.msra.mxu0 0
    %470 = vmatpush.bf16.msra.mxu0 0
    %471 = vmatpush.bf16.msra.mxu0 0
    %472 = vmatpush.bf16.msra.mxu0 %v282
    %473 = vmatpush.bf16.msra.mxu0 %v262
    %474 = vmatmul.bf16.gmra.mxu0 %v334
    %v475 = vpop.f32.mrf.mxu0
    %v476 = vadd.f32 %v102, %v475
    %v477 = vpop.f32.mrf.mxu0
    %478 = vdwg.mxu0
    %479 = vmatpush.bf16.msra.mxu0 0
    %480 = vmatpush.bf16.msra.mxu0 0
    %481 = vmatpush.bf16.msra.mxu0 0
    %482 = vmatpush.bf16.msra.mxu0 0
    %483 = vmatpush.bf16.msra.mxu0 0
    %484 = vmatpush.bf16.msra.mxu0 0
    %485 = vmatpush.bf16.msra.mxu0 %v283
    %486 = vmatpush.bf16.msra.mxu0 %v263
    %487 = vmatmul.bf16.gmra.mxu0 %v334
    %v488 = vpop.f32.mrf.mxu0
    %v489 = vadd.f32 %v103, %v488
    %v490 = vpop.f32.mrf.mxu0
    %491 = vdwg.mxu0
    %492 = vmatpush.bf16.msra.mxu0 0
    %493 = vmatpush.bf16.msra.mxu0 0
    %494 = vmatpush.bf16.msra.mxu0 0
    %495 = vmatpush.bf16.msra.mxu0 0
    %496 = vmatpush.bf16.msra.mxu0 0
    %497 = vmatpush.bf16.msra.mxu0 0
    %498 = vmatpush.bf16.msra.mxu0 %v284
    %499 = vmatpush.bf16.msra.mxu0 %v264
    %500 = vmatmul.bf16.gmra.mxu0 %v334
    %v501 = vpop.f32.mrf.mxu0
    %v502 = vadd.f32 %v104, %v501
    %v503 = vpop.f32.mrf.mxu0
    %504 = vdwg.mxu0
    %505 = vmatpush.bf16.msra.mxu0 0
    %506 = vmatpush.bf16.msra.mxu0 0
    %507 = vmatpush.bf16.msra.mxu0 0
    %508 = vmatpush.bf16.msra.mxu0 0
    %509 = vmatpush.bf16.msra.mxu0 0
    %510 = vmatpush.bf16.msra.mxu0 0
    %511 = vmatpush.bf16.msra.mxu0 %v285
    %512 = vmatpush.bf16.msra.mxu0 %v265
    %513 = vmatmul.bf16.gmra.mxu0 %v334
    %v514 = vpop.f32.mrf.mxu0
    %v515 = vadd.f32 %v105, %v514
    %v516 = vpop.f32.mrf.mxu0
    %517 = vdwg.mxu0
    %518 = vmatpush.bf16.msra.mxu0 0
    %519 = vmatpush.bf16.msra.mxu0 0
    %520 = vmatpush.bf16.msra.mxu0 0
    %521 = vmatpush.bf16.msra.mxu0 0
    %522 = vmatpush.bf16.msra.mxu0 0
    %523 = vmatpush.bf16.msra.mxu0 0
    %524 = vmatpush.bf16.msra.mxu0 %v286
    %525 = vmatpush.bf16.msra.mxu0 %v266
    %526 = vmatmul.bf16.gmra.mxu0 %v334
    %v527 = vpop.f32.mrf.mxu0
    %v528 = vadd.f32 %v106, %v527
    %v529 = vpop.f32.mrf.mxu0
    %530 = vdwg.mxu0
    %531 = vmatpush.bf16.msra.mxu0 0
    %532 = vmatpush.bf16.msra.mxu0 0
    %533 = vmatpush.bf16.msra.mxu0 0
    %534 = vmatpush.bf16.msra.mxu0 0
    %535 = vmatpush.bf16.msra.mxu0 0
    %536 = vmatpush.bf16.msra.mxu0 0
    %537 = vmatpush.bf16.msra.mxu0 %v287
    %538 = vmatpush.bf16.msra.mxu0 %v267
    %539 = vmatmul.bf16.gmra.mxu0 %v334
    %v540 = vpop.f32.mrf.mxu0
    %v541 = vadd.f32 %v107, %v540
    %v542 = vpop.f32.mrf.mxu0
    %543 = vdwg.mxu0
    %544 = vmatpush.bf16.msra.mxu0 0
    %545 = vmatpush.bf16.msra.mxu0 0
    %546 = vmatpush.bf16.msra.mxu0 0
    %547 = vmatpush.bf16.msra.mxu0 0
    %548 = vmatpush.bf16.msra.mxu0 0
    %549 = vmatpush.bf16.msra.mxu0 0
    %550 = vmatpush.bf16.msra.mxu0 %v288
    %551 = vmatpush.bf16.msra.mxu0 %v268
    %552 = vmatmul.bf16.gmra.mxu0 %v334
    %v553 = vpop.f32.mrf.mxu0
    %v554 = vadd.f32 %v108, %v553
    %v555 = vpop.f32.mrf.mxu0
    %556 = vdwg.mxu0
    %557 = vmatpush.bf16.msra.mxu0 0
    %558 = vmatpush.bf16.msra.mxu0 0
    %559 = vmatpush.bf16.msra.mxu0 0
    %560 = vmatpush.bf16.msra.mxu0 0
    %561 = vmatpush.bf16.msra.mxu0 0
    %562 = vmatpush.bf16.msra.mxu0 0
    %563 = vmatpush.bf16.msra.mxu0 %v289
    %564 = vmatpush.bf16.msra.mxu0 %v269
    %565 = vmatmul.bf16.gmra.mxu0 %v334
    %v566 = vpop.f32.mrf.mxu0
    %v567 = vadd.f32 %v109, %v566
    %v568 = vpop.f32.mrf.mxu0
    %569 = vdwg.mxu0
    %570 = vmatpush.bf16.msra.mxu0 0
    %571 = vmatpush.bf16.msra.mxu0 0
    %572 = vmatpush.bf16.msra.mxu0 0
    %573 = vmatpush.bf16.msra.mxu0 0
    %574 = vmatpush.bf16.msra.mxu0 0
    %575 = vmatpush.bf16.msra.mxu0 0
    %576 = vmatpush.bf16.msra.mxu0 %v290
    %577 = vmatpush.bf16.msra.mxu0 %v270
    %578 = vmatmul.bf16.gmra.mxu0 %v334
    %v579 = vpop.f32.mrf.mxu0
    %v580 = vadd.f32 %v110, %v579
    %v581 = vpop.f32.mrf.mxu0
    %582 = vdwg.mxu0
    %583 = vmatpush.bf16.msra.mxu0 0
    %584 = vmatpush.bf16.msra.mxu0 0
    %585 = vmatpush.bf16.msra.mxu0 0
    %586 = vmatpush.bf16.msra.mxu0 0
    %587 = vmatpush.bf16.msra.mxu0 0
    %588 = vmatpush.bf16.msra.mxu0 0
    %589 = vmatpush.bf16.msra.mxu0 %v291
    %590 = vmatpush.bf16.msra.mxu0 %v271
    %591 = vmatmul.bf16.gmra.mxu0 %v334
    %v592 = vpop.f32.mrf.mxu0
    %v593 = vadd.f32 %v111, %v592
    %v594 = vpop.f32.mrf.mxu0
    %595 = vdwg.mxu0
    %v596 = vpack.c.bf16 %v359, %v346
    %v597 = vpack.c.bf16 %v385, %v372
    %v598 = vpack.c.bf16 %v411, %v398
    %v599 = vpack.c.bf16 %v437, %v424
    %v600 = vpack.c.bf16 %v463, %v450
    %v601 = vpack.c.bf16 %v489, %v476
    %v602 = vpack.c.bf16 %v515, %v502
    %v603 = vpack.c.bf16 %v541, %v528
    %v604 = vpack.c.bf16 %v567, %v554
    %v605 = vpack.c.bf16 %v593, %v580
    %v616 = vrot.slane %v596, 3
    %v617 = vrot.slane %v597, 6
    %v618 = vrot.slane %v597, 1
    %v619 = vrot.slane %v598, 4
    %v620 = vrot.slane %v598, 7
    %v621 = vrot.slane %v599, 2
    %v622 = vrot.slane %v599, 5
    %v623 = vrot.slane %v600, 3
    %v624 = vrot.slane %v601, 6
    %v625 = vrot.slane %v601, 1
    %v626 = vrot.slane %v602, 4
    %v627 = vrot.slane %v602, 7
    %v628 = vrot.slane %v603, 2
    %v629 = vrot.slane %v603, 5
    %v630 = vrot.slane %v604, 3
    %v631 = vrot.slane %v605, 6
    %v632 = vrot.slane %v605, 1
    %vm633 = vcmask 1040384
    %v636 = vsel %vm633, %v596, %v616
    %vm637 = vcmask 1042434
    %v640 = vsel %vm637, %v617, %v618
    %vm641 = vcmask 1041408
    %v642 = vsel %vm641, %v636, %v640
    %vm643 = vcmask 1044484
    %v646 = vsel %vm643, %v619, %v620
    %vm647 = vcmask 1046534
    %v650 = vsel %vm647, %v621, %v622
    %vm651 = vcmask 1045508
    %v652 = vsel %vm651, %v646, %v650
    %vm653 = vcmask 1043456
    %v654 = vsel %vm653, %v642, %v652
    %v657 = vsel %vm633, %v600, %v623
    %v660 = vsel %vm637, %v624, %v625
    %v661 = vsel %vm641, %v657, %v660
    %v664 = vsel %vm643, %v626, %v627
    %v667 = vsel %vm647, %v628, %v629
    %v668 = vsel %vm651, %v664, %v667
    %v669 = vsel %vm653, %v661, %v668
    %v672 = vsel %vm633, %v604, %v630
    %v675 = vsel %vm637, %v631, %v632
    %v676 = vsel %vm641, %v672, %v675
    %680 = vst [vmem:[%s3] sm:$0xff] %v654
    %681 = vst [vmem:[%s3 + $0x8] sm:$0xff] %v669
    %682 = vst [vmem:[%s3 + $0x10] sm:$0xf] %v676
    // Predicated region
    $region22: #{_lambda_.2} parent=1 // pred_check
      _
    $region23: #{_lambda_.2} parent=1 // pred_check_branch
      %684 = sbr.rel (0) target = $region25
    $region24: #{_lambda_.2} parent=1 // pred_region
      _
    $region25: #{_lambda_.2} parent=1 // pred_fallthru
      _
    // Predicated region
    $region26: #{_lambda_.2} parent=1 // pred_check
      _
    $region27: #{_lambda_.2} parent=1 // pred_check_branch
      %686 = sbr.rel (0) target = $region29
    $region28: #{_lambda_.2} parent=1 // pred_region
      _
    $region29: #{_lambda_.2} parent=1 // pred_fallthru
      _
    %687 = vsyncpa [#allocation3], 1
    %688 = vsyncpa [#allocation5], 1

</llo_original>
